<compile_context>
chip_gen: v7x
topology: tpu7x:2x2x1
jax: 0.10.0
libtpu: 0.0.40
codegen_flags: <defaults>
</compile_context>

<pallas_src>
import math
from functools import partial

import jax
import jax.numpy as jnp
from jax.experimental import pallas as pl
from jax.experimental.pallas import tpu as pltpu


def _attn_block_kernel(x_q_ref, x_kv_ref, mask_ref,
                       wq_ref, wk_ref, wv_ref, bq_ref, bk_ref, bv_ref,
                       wo_ref, bo_ref, gamma_ref, beta_ref,
                       o_ref, k_cache, v_cache,
                       *, num_heads, eps, approx_recip, compute_dtype):
    qi = pl.program_id(1)

    H = num_heads
    Tq = x_q_ref.shape[1]
    S = x_kv_ref.shape[1]
    E = x_q_ref.shape[2]
    Dh = E // H
    scale = 1.0 / math.sqrt(Dh)

    # ---- K/V projection, cached head-major across the query-tile axis.
    #      Only recomputed when the batch element changes (qi == 0). ----
    @pl.when(qi == 0)
    def _():
        xkv = x_kv_ref[0].astype(compute_dtype)                     # (S, E)
        k = jnp.dot(xkv, wk_ref[...],
                    preferred_element_type=jnp.float32) + bk_ref[...]
        v = jnp.dot(xkv, wv_ref[...],
                    preferred_element_type=jnp.float32) + bv_ref[...]
        k_cache[...] = jnp.stack(
            [k[:, h * Dh:(h + 1) * Dh] for h in range(H)],
            axis=0).astype(k_cache.dtype)                           # (H, S, Dh)
        v_cache[...] = jnp.stack(
            [v[:, h * Dh:(h + 1) * Dh] for h in range(H)],
            axis=0).astype(v_cache.dtype)                           # (H, S, Dh)

    # ---- Q projection for this query tile; scale applied once (not per head).
    xq = x_q_ref[0]                                                 # (Tq, E) f32
    q = jnp.dot(xq.astype(compute_dtype), wq_ref[...],
                preferred_element_type=jnp.float32) + bq_ref[...]
    q = q * scale
    q3 = jnp.stack([q[:, h * Dh:(h + 1) * Dh] for h in range(H)],
                   axis=0).astype(compute_dtype)                    # (H, Tq, Dh)

    # ---- key-padding mask -> additive bias, computed once (not per head).
    #      Large finite negative instead of -inf: fully masked rows yield a
    #      uniform distribution instead of NaN. ----
    bias = jnp.where(mask_ref[0] > 0.5,
                     jnp.float32(-1e30), jnp.float32(0.0))          # (1, S)

    # ---- batched-head attention (all heads in one MXU einsum) ----
    s = jnp.einsum('hqd,hkd->hqk', q3, k_cache[...],
                   preferred_element_type=jnp.float32)              # (H, Tq, S)
    s = s + bias[None, :, :]
    s_max = jnp.max(s, axis=-1, keepdims=True)
    p = jnp.exp(s - s_max)
    inv = pl.reciprocal(jnp.sum(p, axis=-1, keepdims=True), approx=approx_recip)
    p = (p * inv).astype(compute_dtype)

    o3 = jnp.einsum('hqk,hkd->hqd', p, v_cache[...],
                    preferred_element_type=jnp.float32)             # (H, Tq, Dh)

    # ---- out projection fused per head into one f32 accumulator (no concat).
    attn = jnp.zeros((Tq, E), dtype=jnp.float32)
    for h in range(H):
        attn = attn + jnp.dot(o3[h].astype(compute_dtype),
                              wo_ref[pl.ds(h * Dh, Dh), :],
                              preferred_element_type=jnp.float32)
    attn = attn + bo_ref[...]

    # ---- residual + LayerNorm (f32) ----
    y = xq + attn
    mean = jnp.mean(y, axis=-1, keepdims=True)
    yc = y - mean
    var = jnp.mean(yc * yc, axis=-1, keepdims=True)
    out = yc * jax.lax.rsqrt(var + eps) * gamma_ref[...] + beta_ref[...]
    o_ref[0] = out.astype(o_ref.dtype)


def _pick_q_tile(S, target):
    """Largest divisor of S that is <= target and sublane-friendly."""
    if S <= target:
        return S
    if S % 8 == 0:
        for t in range(min(target, S), 7, -1):
            if t % 8 == 0 and S % t == 0:
                return t
    return S


def self_attention_block(x, x_mask, params, *, num_heads, eps=1e-5,
                         q_tile=256, compute_dtype=jnp.float32,
                         approx_recip=True):
    """x: (B, S, E) f32; x_mask: (B, S) f32, 1.0 where the key is padded."""
    B, S, E = x.shape
    assert E % num_heads == 0
    Dh = E // num_heads
    w_in, b_in, w_out, b_out, gamma, beta = params

    # Split the fused in-projection wrapper-side (cheap XLA slices) so the
    # kernel never materializes a (S, 3E) buffer; optionally cast weights to
    # the MXU compute dtype (halves weight DMA bytes for bf16).
    wq = w_in[:, 0:E].astype(compute_dtype)
    wk = w_in[:, E:2 * E].astype(compute_dtype)
    wv = w_in[:, 2 * E:3 * E].astype(compute_dtype)
    bq = b_in[:, 0:E]
    bk = b_in[:, E:2 * E]
    bv = b_in[:, 2 * E:3 * E]
    wo = w_out.astype(compute_dtype)

    # Mask reshaped so its block equals the full (1, S) trailing dims.
    mask3 = x_mask.reshape(B, 1, S).astype(jnp.float32)

    tq = _pick_q_tile(S, q_tile)
    nq = S // tq

    # Rough VMEM budget (double-buffered blocks + scratch + working set).
    f32b = 4
    cb = jnp.dtype(compute_dtype).itemsize
    est = (2 * (tq * E + S * E + S) * f32b          # x_q, x_kv, mask blocks
           + 2 * tq * E * f32b                      # output block
           + 2 * 4 * E * E * cb                     # Wq/Wk/Wv/Wo
           + 2 * 6 * E * f32b                       # biases, gamma, beta
           + 2 * num_heads * S * Dh * cb            # K/V caches
           + 2 * num_heads * tq * S * f32b          # scores / probs
           + (8 << 20))                             # headroom
    vmem_limit = int(min(max(est, 32 << 20), 64 << 20))

    kernel = partial(_attn_block_kernel, num_heads=num_heads, eps=eps,
                     approx_recip=approx_recip, compute_dtype=compute_dtype)

    const = lambda b, q: (0, 0)

    return pl.pallas_call(
        kernel,
        out_shape=jax.ShapeDtypeStruct((B, S, E), x.dtype),
        grid_spec=pltpu.PrefetchScalarGridSpec(
            num_scalar_prefetch=0,
            grid=(B, nq),
            in_specs=[
                pl.BlockSpec((1, tq, E), lambda b, q: (b, q, 0)),   # x (query tile)
                pl.BlockSpec((1, S, E), lambda b, q: (b, 0, 0)),    # x (K/V source)
                pl.BlockSpec((1, 1, S), lambda b, q: (b, 0, 0)),    # key padding mask
                pl.BlockSpec((E, E), const),                        # Wq
                pl.BlockSpec((E, E), const),                        # Wk
                pl.BlockSpec((E, E), const),                        # Wv
                pl.BlockSpec((1, E), const),                        # bq
                pl.BlockSpec((1, E), const),                        # bk
                pl.BlockSpec((1, E), const),                        # bv
                pl.BlockSpec((E, E), const),                        # Wo
                pl.BlockSpec((1, E), const),                        # bo
                pl.BlockSpec((1, E), const),                        # gamma
                pl.BlockSpec((1, E), const),                        # beta
            ],
            out_specs=pl.BlockSpec((1, tq, E), lambda b, q: (b, q, 0)),
            scratch_shapes=[
                pltpu.VMEM((num_heads, S, Dh), compute_dtype),      # K cache
                pltpu.VMEM((num_heads, S, Dh), compute_dtype),      # V cache
            ],
        ),
        compiler_params=pltpu.CompilerParams(
            dimension_semantics=("parallel", "arbitrary"),
            vmem_limit_bytes=vmem_limit),
    )(x, x, mask3, wq, wk, wv, bq, bk, bv, wo, b_out, gamma, beta)


def reference(x, x_mask, params, *, num_heads, eps=1e-5):
    """Pure-JAX reference mirroring torch.nn.MultiheadAttention + LayerNorm."""
    w_in, b_in, w_out, b_out, gamma, beta = params
    B, S, E = x.shape
    Dh = E // num_heads
    qkv = jnp.einsum("bse,ef->bsf", x, w_in) + b_in[0]
    q, k, v = qkv[..., :E], qkv[..., E:2 * E], qkv[..., 2 * E:]
    rs = lambda t: t.reshape(B, S, num_heads, Dh).transpose(0, 2, 1, 3)
    q, k, v = rs(q), rs(k), rs(v)
    s = jnp.einsum("bhqd,bhkd->bhqk", q, k) / math.sqrt(Dh)
    s = jnp.where(x_mask[:, None, None, :] > 0.5, -jnp.inf, s)
    p = jax.nn.softmax(s, axis=-1)
    o = jnp.einsum("bhqk,bhkd->bhqd", p, v).transpose(0, 2, 1, 3).reshape(B, S, E)
    o = jnp.einsum("bse,ef->bsf", o, w_out) + b_out[0]
    y = x + o
    mu = jnp.mean(y, -1, keepdims=True)
    var = jnp.mean((y - mu) ** 2, -1, keepdims=True)
    return (y - mu) * jax.lax.rsqrt(var + eps) * gamma[0] + beta[0]


if __name__ == "__main__":
    B, S, E, H = 2, 8, 32, 4  # batch, seq, hidden_dim, num_heads

    key = jax.random.PRNGKey(0)
    k_x, k_wi, k_bi, k_wo, k_bo = jax.random.split(key, 5)

    x = jax.random.normal(k_x, (B, S, E), dtype=jnp.float32)

    # key_padding_mask: 1.0 => ignore that key position.
    x_mask = jnp.zeros((B, S), dtype=jnp.float32).at[1, -2:].set(1.0)

    # Parameter shapes mirror nn.MultiheadAttention / nn.LayerNorm.
    # W_in stored pre-transposed as (E, 3E) so the math is x @ W_in.
    w_in = jax.random.normal(k_wi, (E, 3 * E), dtype=jnp.float32) / math.sqrt(E)
    b_in = jax.random.normal(k_bi, (1, 3 * E), dtype=jnp.float32) * 0.02
    w_out = jax.random.normal(k_wo, (E, E), dtype=jnp.float32) / math.sqrt(E)
    b_out = jax.random.normal(k_bo, (1, E), dtype=jnp.float32) * 0.02
    gamma = jnp.ones((1, E), dtype=jnp.float32)
    beta = jnp.zeros((1, E), dtype=jnp.float32)
    params = (w_in, b_in, w_out, b_out, gamma, beta)

    ref = reference(x, x_mask, params, num_heads=H)

    # Exact-math configuration (f32 MXU operands, exact reciprocal): tight check.
    out_f32 = self_attention_block(x, x_mask, params, num_heads=H,
                                   compute_dtype=jnp.float32,
                                   approx_recip=False)
    out_f32 = jax.block_until_ready(out_f32)
    assert out_f32.shape == (B, S, E)
    err32 = jnp.max(jnp.abs(out_f32 - ref))
    assert jnp.allclose(out_f32, ref, atol=1e-4, rtol=1e-4), \
        f"f32 max err {err32}"

    # Performance configuration (bf16 MXU operands + approx EUP reciprocal,
    # f32 accumulation / softmax / LayerNorm): loose check.
    out_bf16 = self_attention_block(x, x_mask, params, num_heads=H,
                                    compute_dtype=jnp.bfloat16,
                                    approx_recip=True)
    out_bf16 = jax.block_until_ready(out_bf16)
    errbf = jnp.max(jnp.abs(out_bf16 - ref))
    assert jnp.allclose(out_bf16, ref, atol=2e-1, rtol=2e-1), \
        f"bf16 max err {errbf}"

    print("KERNEL_OK")
</pallas_src>

<mosaic_0001>
module attributes {stable_mosaic.version = 11 : i64} {
  func.func @_attn_block_kernel(%arg0: i32, %arg1: i32, %arg2: memref<1x8x32xf32, #tpu.memory_space<vmem>>, %arg3: memref<1x8x32xf32, #tpu.memory_space<vmem>>, %arg4: memref<1x1x8xf32, #tpu.memory_space<vmem>>, %arg5: memref<32x32xf32, #tpu.memory_space<vmem>>, %arg6: memref<32x32xf32, #tpu.memory_space<vmem>>, %arg7: memref<32x32xf32, #tpu.memory_space<vmem>>, %arg8: memref<1x32xf32, #tpu.memory_space<vmem>>, %arg9: memref<1x32xf32, #tpu.memory_space<vmem>>, %arg10: memref<1x32xf32, #tpu.memory_space<vmem>>, %arg11: memref<32x32xf32, #tpu.memory_space<vmem>>, %arg12: memref<1x32xf32, #tpu.memory_space<vmem>>, %arg13: memref<1x32xf32, #tpu.memory_space<vmem>>, %arg14: memref<1x32xf32, #tpu.memory_space<vmem>>, %arg15: memref<1x8x32xf32, #tpu.memory_space<vmem>>, %arg16: memref<4x8x8xf32, #tpu.memory_space<vmem>>, %arg17: memref<4x8x8xf32, #tpu.memory_space<vmem>>) attributes {dimension_semantics = [#tpu.dimension_semantics<parallel>, #tpu.dimension_semantics<arbitrary>], iteration_bounds = array<i64: 2, 1>, scalar_prefetch = 0 : i64, scratch_operands = 2 : i64, tpu.core_type = #tpu.core_type<tc>, window_params = [{transform_indices = @transform_0, window_bounds = array<i64: 1, 8, 32>}, {transform_indices = @transform_1, window_bounds = array<i64: 1, 8, 32>}, {transform_indices = @transform_2, window_bounds = array<i64: 1, 1, 8>}, {pipeline_mode = #tpu.pipeline_mode<synchronous>, transform_indices = @transform_3, window_bounds = array<i64: 32, 32>}, {pipeline_mode = #tpu.pipeline_mode<synchronous>, transform_indices = @transform_4, window_bounds = array<i64: 32, 32>}, {pipeline_mode = #tpu.pipeline_mode<synchronous>, transform_indices = @transform_5, window_bounds = array<i64: 32, 32>}, {pipeline_mode = #tpu.pipeline_mode<synchronous>, transform_indices = @transform_6, window_bounds = array<i64: 1, 32>}, {pipeline_mode = #tpu.pipeline_mode<synchronous>, transform_indices = @transform_7, window_bounds = array<i64: 1, 32>}, {pipeline_mode = #tpu.pipeline_mode<synchronous>, transform_indices = @transform_8, window_bounds = array<i64: 1, 32>}, {pipeline_mode = #tpu.pipeline_mode<synchronous>, transform_indices = @transform_9, window_bounds = array<i64: 32, 32>}, {pipeline_mode = #tpu.pipeline_mode<synchronous>, transform_indices = @transform_10, window_bounds = array<i64: 1, 32>}, {pipeline_mode = #tpu.pipeline_mode<synchronous>, transform_indices = @transform_11, window_bounds = array<i64: 1, 32>}, {pipeline_mode = #tpu.pipeline_mode<synchronous>, transform_indices = @transform_12, window_bounds = array<i64: 1, 32>}, {transform_indices = @transform_13, window_bounds = array<i64: 1, 8, 32>}]} {
    %c0_i32 = arith.constant 0 : i32
    %0 = arith.cmpi eq, %arg1, %c0_i32 : i32
    %1 = arith.extui %0 : i1 to i32
    %c0_i32_0 = arith.constant 0 : i32
    %2 = arith.cmpi ne, %1, %c0_i32_0 : i32
    scf.if %2 {
      %c0_48 = arith.constant 0 : index
      %c0_49 = arith.constant 0 : index
      %c0_50 = arith.constant 0 : index
      %95 = vector.load %arg3[%c0_48, %c0_49, %c0_50] : memref<1x8x32xf32, #tpu.memory_space<vmem>>, vector<1x8x32xf32>
      %96 = vector.shape_cast %95 : vector<1x8x32xf32> to vector<8x32xf32>
      %c0_51 = arith.constant 0 : index
      %c0_52 = arith.constant 0 : index
      %97 = vector.load %arg6[%c0_51, %c0_52] : memref<32x32xf32, #tpu.memory_space<vmem>>, vector<32x32xf32>
      %cst_53 = arith.constant dense<0.000000e+00> : vector<8x32xf32>
      %98 = tpu.matmul %96, %97, %cst_53 {dimension_numbers = #tpu.dot_dimension_numbers<[1], [0], [0], [1], [0, 0, 1, 1], [], []>} : vector<8x32xf32>, vector<32x32xf32>, vector<8x32xf32> -> vector<8x32xf32>
      %c0_54 = arith.constant 0 : index
      %c0_55 = arith.constant 0 : index
      %99 = vector.load %arg9[%c0_54, %c0_55] : memref<1x32xf32, #tpu.memory_space<vmem>>, vector<1x32xf32>
      %100 = vector.broadcast %99 : vector<1x32xf32> to vector<8x32xf32>
      %101 = arith.addf %98, %100 : vector<8x32xf32>
      %c0_56 = arith.constant 0 : index
      %c0_57 = arith.constant 0 : index
      %102 = vector.load %arg7[%c0_56, %c0_57] : memref<32x32xf32, #tpu.memory_space<vmem>>, vector<32x32xf32>
      %cst_58 = arith.constant dense<0.000000e+00> : vector<8x32xf32>
      %103 = tpu.matmul %96, %102, %cst_58 {dimension_numbers = #tpu.dot_dimension_numbers<[1], [0], [0], [1], [0, 0, 1, 1], [], []>} : vector<8x32xf32>, vector<32x32xf32>, vector<8x32xf32> -> vector<8x32xf32>
      %c0_59 = arith.constant 0 : index
      %c0_60 = arith.constant 0 : index
      %104 = vector.load %arg10[%c0_59, %c0_60] : memref<1x32xf32, #tpu.memory_space<vmem>>, vector<1x32xf32>
      %105 = vector.broadcast %104 : vector<1x32xf32> to vector<8x32xf32>
      %106 = arith.addf %103, %105 : vector<8x32xf32>
      %107 = vector.extract_strided_slice %101 {offsets = [0, 0], sizes = [8, 8], strides = [1, 1]} : vector<8x32xf32> to vector<8x8xf32>
      %108 = vector.extract_strided_slice %101 {offsets = [0, 8], sizes = [8, 8], strides = [1, 1]} : vector<8x32xf32> to vector<8x8xf32>
      %109 = vector.extract_strided_slice %101 {offsets = [0, 16], sizes = [8, 8], strides = [1, 1]} : vector<8x32xf32> to vector<8x8xf32>
      %110 = vector.extract_strided_slice %101 {offsets = [0, 24], sizes = [8, 8], strides = [1, 1]} : vector<8x32xf32> to vector<8x8xf32>
      %111 = vector.shape_cast %107 : vector<8x8xf32> to vector<1x8x8xf32>
      %112 = vector.shape_cast %108 : vector<8x8xf32> to vector<1x8x8xf32>
      %113 = vector.shape_cast %109 : vector<8x8xf32> to vector<1x8x8xf32>
      %114 = vector.shape_cast %110 : vector<8x8xf32> to vector<1x8x8xf32>
      %115 = tpu.concatenate %111, %112, %113, %114 in 0 : vector<1x8x8xf32>, vector<1x8x8xf32>, vector<1x8x8xf32>, vector<1x8x8xf32> -> vector<4x8x8xf32>
      %c0_61 = arith.constant 0 : index
      %c0_62 = arith.constant 0 : index
      %c0_63 = arith.constant 0 : index
      %116 = vector.load %arg16[%c0_61, %c0_62, %c0_63] : memref<4x8x8xf32, #tpu.memory_space<vmem>>, vector<4x8x8xf32>
      tpu.vector_store %arg16[%c0_61, %c0_62, %c0_63], %115 {strides = array<i32>} : memref<4x8x8xf32, #tpu.memory_space<vmem>>, vector<4x8x8xf32>,
      %117 = vector.extract_strided_slice %106 {offsets = [0, 0], sizes = [8, 8], strides = [1, 1]} : vector<8x32xf32> to vector<8x8xf32>
      %118 = vector.extract_strided_slice %106 {offsets = [0, 8], sizes = [8, 8], strides = [1, 1]} : vector<8x32xf32> to vector<8x8xf32>
      %119 = vector.extract_strided_slice %106 {offsets = [0, 16], sizes = [8, 8], strides = [1, 1]} : vector<8x32xf32> to vector<8x8xf32>
      %120 = vector.extract_strided_slice %106 {offsets = [0, 24], sizes = [8, 8], strides = [1, 1]} : vector<8x32xf32> to vector<8x8xf32>
      %121 = vector.shape_cast %117 : vector<8x8xf32> to vector<1x8x8xf32>
      %122 = vector.shape_cast %118 : vector<8x8xf32> to vector<1x8x8xf32>
      %123 = vector.shape_cast %119 : vector<8x8xf32> to vector<1x8x8xf32>
      %124 = vector.shape_cast %120 : vector<8x8xf32> to vector<1x8x8xf32>
      %125 = tpu.concatenate %121, %122, %123, %124 in 0 : vector<1x8x8xf32>, vector<1x8x8xf32>, vector<1x8x8xf32>, vector<1x8x8xf32> -> vector<4x8x8xf32>
      %c0_64 = arith.constant 0 : index
      %c0_65 = arith.constant 0 : index
      %c0_66 = arith.constant 0 : index
      %126 = vector.load %arg17[%c0_64, %c0_65, %c0_66] : memref<4x8x8xf32, #tpu.memory_space<vmem>>, vector<4x8x8xf32>
      tpu.vector_store %arg17[%c0_64, %c0_65, %c0_66], %125 {strides = array<i32>} : memref<4x8x8xf32, #tpu.memory_space<vmem>>, vector<4x8x8xf32>,
    } else {
    }
    %c0 = arith.constant 0 : index
    %c0_1 = arith.constant 0 : index
    %c0_2 = arith.constant 0 : index
    %3 = vector.load %arg2[%c0, %c0_1, %c0_2] : memref<1x8x32xf32, #tpu.memory_space<vmem>>, vector<1x8x32xf32>
    %4 = vector.shape_cast %3 : vector<1x8x32xf32> to vector<8x32xf32>
    %c0_3 = arith.constant 0 : index
    %c0_4 = arith.constant 0 : index
    %5 = vector.load %arg5[%c0_3, %c0_4] : memref<32x32xf32, #tpu.memory_space<vmem>>, vector<32x32xf32>
    %cst = arith.constant dense<0.000000e+00> : vector<8x32xf32>
    %6 = tpu.matmul %4, %5, %cst {dimension_numbers = #tpu.dot_dimension_numbers<[1], [0], [0], [1], [0, 0, 1, 1], [], []>} : vector<8x32xf32>, vector<32x32xf32>, vector<8x32xf32> -> vector<8x32xf32>
    %c0_5 = arith.constant 0 : index
    %c0_6 = arith.constant 0 : index
    %7 = vector.load %arg8[%c0_5, %c0_6] : memref<1x32xf32, #tpu.memory_space<vmem>>, vector<1x32xf32>
    %8 = vector.broadcast %7 : vector<1x32xf32> to vector<8x32xf32>
    %9 = arith.addf %6, %8 : vector<8x32xf32>
    %cst_7 = arith.constant 0.353553385 : f32
    %10 = vector.broadcast %cst_7 : f32 to vector<8x32xf32>
    %11 = arith.mulf %9, %10 : vector<8x32xf32>
    %12 = vector.extract_strided_slice %11 {offsets = [0, 0], sizes = [8, 8], strides = [1, 1]} : vector<8x32xf32> to vector<8x8xf32>
    %13 = vector.extract_strided_slice %11 {offsets = [0, 8], sizes = [8, 8], strides = [1, 1]} : vector<8x32xf32> to vector<8x8xf32>
    %14 = vector.extract_strided_slice %11 {offsets = [0, 16], sizes = [8, 8], strides = [1, 1]} : vector<8x32xf32> to vector<8x8xf32>
    %15 = vector.extract_strided_slice %11 {offsets = [0, 24], sizes = [8, 8], strides = [1, 1]} : vector<8x32xf32> to vector<8x8xf32>
    %16 = vector.shape_cast %12 : vector<8x8xf32> to vector<1x8x8xf32>
    %17 = vector.shape_cast %13 : vector<8x8xf32> to vector<1x8x8xf32>
    %18 = vector.shape_cast %14 : vector<8x8xf32> to vector<1x8x8xf32>
    %19 = vector.shape_cast %15 : vector<8x8xf32> to vector<1x8x8xf32>
    %20 = tpu.concatenate %16, %17, %18, %19 in 0 : vector<1x8x8xf32>, vector<1x8x8xf32>, vector<1x8x8xf32>, vector<1x8x8xf32> -> vector<4x8x8xf32>
    %c0_8 = arith.constant 0 : index
    %c0_9 = arith.constant 0 : index
    %c0_10 = arith.constant 0 : index
    %21 = vector.load %arg4[%c0_8, %c0_9, %c0_10] : memref<1x1x8xf32, #tpu.memory_space<vmem>>, vector<1x1x8xf32>
    %22 = vector.shape_cast %21 : vector<1x1x8xf32> to vector<1x8xf32>
    %cst_11 = arith.constant 5.000000e-01 : f32
    %23 = vector.broadcast %cst_11 : f32 to vector<1x8xf32>
    %24 = arith.cmpf ogt, %22, %23 : vector<1x8xf32>
    %cst_12 = arith.constant -1.000000e+30 : f32
    %cst_13 = arith.constant 0.000000e+00 : f32
    %25 = vector.broadcast %cst_12 : f32 to vector<1x8xf32>
    %26 = vector.broadcast %cst_13 : f32 to vector<1x8xf32>
    %27 = arith.select %24, %25, %26 : vector<1x8xi1>, vector<1x8xf32>
    %c0_14 = arith.constant 0 : index
    %c0_15 = arith.constant 0 : index
    %c0_16 = arith.constant 0 : index
    %28 = vector.load %arg16[%c0_14, %c0_15, %c0_16] : memref<4x8x8xf32, #tpu.memory_space<vmem>>, vector<4x8x8xf32>
    "tpu.trace_start"() <{level = 10 : i32, message = "hqd,hkd->hqk"}> : () -> ()
    %cst_17 = arith.constant dense<0.000000e+00> : vector<4x8x8xf32>
    %29 = tpu.matmul %20, %28, %cst_17 {dimension_numbers = #tpu.dot_dimension_numbers<[2], [2], [1], [1], [0, 0, 0, 1, 1, 1], [0], [0]>} : vector<4x8x8xf32>, vector<4x8x8xf32>, vector<4x8x8xf32> -> vector<4x8x8xf32>
    "tpu.trace_stop"() : () -> ()
    %30 = vector.shape_cast %27 : vector<1x8xf32> to vector<1x1x8xf32>
    %31 = vector.broadcast %30 : vector<1x1x8xf32> to vector<4x8x8xf32>
    %32 = arith.addf %29, %31 : vector<4x8x8xf32>
    %cst_18 = arith.constant dense<0xFF800000> : vector<4x8xf32>
    %33 = vector.multi_reduction <maximumf>, %32, %cst_18 [2] : vector<4x8x8xf32> to vector<4x8xf32>
    %34 = vector.shape_cast %33 : vector<4x8xf32> to vector<4x8x1xf32>
    %35 = vector.broadcast %34 : vector<4x8x1xf32> to vector<4x8x8xf32>
    %36 = arith.subf %32, %35 : vector<4x8x8xf32>
    %37 = math.exp %36 : vector<4x8x8xf32>
    %cst_19 = arith.constant dense<0.000000e+00> : vector<4x8xf32>
    %38 = vector.multi_reduction <add>, %37, %cst_19 [2] : vector<4x8x8xf32> to vector<4x8xf32>
    %39 = vector.shape_cast %38 : vector<4x8xf32> to vector<4x8x1xf32>
    %40 = tpu.reciprocal %39 : vector<4x8x1xf32> -> vector<4x8x1xf32>
    %41 = vector.broadcast %40 : vector<4x8x1xf32> to vector<4x8x8xf32>
    %42 = arith.mulf %37, %41 : vector<4x8x8xf32>
    %c0_20 = arith.constant 0 : index
    %c0_21 = arith.constant 0 : index
    %c0_22 = arith.constant 0 : index
    %43 = vector.load %arg17[%c0_20, %c0_21, %c0_22] : memref<4x8x8xf32, #tpu.memory_space<vmem>>, vector<4x8x8xf32>
    "tpu.trace_start"() <{level = 10 : i32, message = "hqk,hkd->hqd"}> : () -> ()
    %cst_23 = arith.constant dense<0.000000e+00> : vector<4x8x8xf32>
    %44 = tpu.matmul %42, %43, %cst_23 {dimension_numbers = #tpu.dot_dimension_numbers<[2], [1], [1], [2], [0, 0, 0, 1, 1, 2], [0], [0]>} : vector<4x8x8xf32>, vector<4x8x8xf32>, vector<4x8x8xf32> -> vector<4x8x8xf32>
    %cst_24 = arith.constant 0.000000e+00 : f32
    "tpu.trace_stop"() : () -> ()
    %45 = vector.broadcast %cst_24 : f32 to vector<8x32xf32>
    %46 = vector.extract_strided_slice %44 {offsets = [0, 0, 0], sizes = [1, 8, 8], strides = [1, 1, 1]} : vector<4x8x8xf32> to vector<1x8x8xf32>
    %47 = vector.shape_cast %46 : vector<1x8x8xf32> to vector<8x8xf32>
    %c0_25 = arith.constant 0 : index
    %c0_26 = arith.constant 0 : index
    %48 = vector.load %arg11[%c0_25, %c0_26] : memref<32x32xf32, #tpu.memory_space<vmem>>, vector<8x32xf32>
    %cst_27 = arith.constant dense<0.000000e+00> : vector<8x32xf32>
    %49 = tpu.matmul %47, %48, %cst_27 {dimension_numbers = #tpu.dot_dimension_numbers<[1], [0], [0], [1], [0, 0, 1, 1], [], []>} : vector<8x8xf32>, vector<8x32xf32>, vector<8x32xf32> -> vector<8x32xf32>
    %50 = arith.addf %45, %49 : vector<8x32xf32>
    %51 = vector.extract_strided_slice %44 {offsets = [1, 0, 0], sizes = [1, 8, 8], strides = [1, 1, 1]} : vector<4x8x8xf32> to vector<1x8x8xf32>
    %52 = vector.shape_cast %51 : vector<1x8x8xf32> to vector<8x8xf32>
    %c8 = arith.constant 8 : index
    %c0_28 = arith.constant 0 : index
    %53 = vector.load %arg11[%c8, %c0_28] : memref<32x32xf32, #tpu.memory_space<vmem>>, vector<8x32xf32>
    %cst_29 = arith.constant dense<0.000000e+00> : vector<8x32xf32>
    %54 = tpu.matmul %52, %53, %cst_29 {dimension_numbers = #tpu.dot_dimension_numbers<[1], [0], [0], [1], [0, 0, 1, 1], [], []>} : vector<8x8xf32>, vector<8x32xf32>, vector<8x32xf32> -> vector<8x32xf32>
    %55 = arith.addf %50, %54 : vector<8x32xf32>
    %56 = vector.extract_strided_slice %44 {offsets = [2, 0, 0], sizes = [1, 8, 8], strides = [1, 1, 1]} : vector<4x8x8xf32> to vector<1x8x8xf32>
    %57 = vector.shape_cast %56 : vector<1x8x8xf32> to vector<8x8xf32>
    %c16 = arith.constant 16 : index
    %c0_30 = arith.constant 0 : index
    %58 = vector.load %arg11[%c16, %c0_30] : memref<32x32xf32, #tpu.memory_space<vmem>>, vector<8x32xf32>
    %cst_31 = arith.constant dense<0.000000e+00> : vector<8x32xf32>
    %59 = tpu.matmul %57, %58, %cst_31 {dimension_numbers = #tpu.dot_dimension_numbers<[1], [0], [0], [1], [0, 0, 1, 1], [], []>} : vector<8x8xf32>, vector<8x32xf32>, vector<8x32xf32> -> vector<8x32xf32>
    %60 = arith.addf %55, %59 : vector<8x32xf32>
    %61 = vector.extract_strided_slice %44 {offsets = [3, 0, 0], sizes = [1, 8, 8], strides = [1, 1, 1]} : vector<4x8x8xf32> to vector<1x8x8xf32>
    %62 = vector.shape_cast %61 : vector<1x8x8xf32> to vector<8x8xf32>
    %c24 = arith.constant 24 : index
    %c0_32 = arith.constant 0 : index
    %63 = vector.load %arg11[%c24, %c0_32] : memref<32x32xf32, #tpu.memory_space<vmem>>, vector<8x32xf32>
    %cst_33 = arith.constant dense<0.000000e+00> : vector<8x32xf32>
    %64 = tpu.matmul %62, %63, %cst_33 {dimension_numbers = #tpu.dot_dimension_numbers<[1], [0], [0], [1], [0, 0, 1, 1], [], []>} : vector<8x8xf32>, vector<8x32xf32>, vector<8x32xf32> -> vector<8x32xf32>
    %65 = arith.addf %60, %64 : vector<8x32xf32>
    %c0_34 = arith.constant 0 : index
    %c0_35 = arith.constant 0 : index
    %66 = vector.load %arg12[%c0_34, %c0_35] : memref<1x32xf32, #tpu.memory_space<vmem>>, vector<1x32xf32>
    %67 = vector.broadcast %66 : vector<1x32xf32> to vector<8x32xf32>
    %68 = arith.addf %65, %67 : vector<8x32xf32>
    %69 = arith.addf %4, %68 : vector<8x32xf32>
    %cst_36 = arith.constant dense<0.000000e+00> : vector<8xf32>
    %70 = vector.multi_reduction <add>, %69, %cst_36 [1] : vector<8x32xf32> to vector<8xf32>
    %71 = vector.shape_cast %70 : vector<8xf32> to vector<8x1xf32>
    %cst_37 = arith.constant 3.200000e+01 : f32
    %72 = vector.broadcast %cst_37 : f32 to vector<8x1xf32>
    %73 = arith.divf %71, %72 : vector<8x1xf32>
    %74 = vector.broadcast %73 : vector<8x1xf32> to vector<8x32xf32>
    %75 = arith.subf %69, %74 : vector<8x32xf32>
    %76 = arith.mulf %75, %75 : vector<8x32xf32>
    %cst_38 = arith.constant dense<0.000000e+00> : vector<8xf32>
    %77 = vector.multi_reduction <add>, %76, %cst_38 [1] : vector<8x32xf32> to vector<8xf32>
    %78 = vector.shape_cast %77 : vector<8xf32> to vector<8x1xf32>
    %cst_39 = arith.constant 3.200000e+01 : f32
    %79 = vector.broadcast %cst_39 : f32 to vector<8x1xf32>
    %80 = arith.divf %78, %79 : vector<8x1xf32>
    %cst_40 = arith.constant 9.99999974E-6 : f32
    %81 = vector.broadcast %cst_40 : f32 to vector<8x1xf32>
    %82 = arith.addf %80, %81 : vector<8x1xf32>
    %83 = math.rsqrt %82 : vector<8x1xf32>
    %84 = vector.broadcast %83 : vector<8x1xf32> to vector<8x32xf32>
    %85 = arith.mulf %75, %84 : vector<8x32xf32>
    %c0_41 = arith.constant 0 : index
    %c0_42 = arith.constant 0 : index
    %86 = vector.load %arg13[%c0_41, %c0_42] : memref<1x32xf32, #tpu.memory_space<vmem>>, vector<1x32xf32>
    %87 = vector.broadcast %86 : vector<1x32xf32> to vector<8x32xf32>
    %88 = arith.mulf %85, %87 : vector<8x32xf32>
    %c0_43 = arith.constant 0 : index
    %c0_44 = arith.constant 0 : index
    %89 = vector.load %arg14[%c0_43, %c0_44] : memref<1x32xf32, #tpu.memory_space<vmem>>, vector<1x32xf32>
    %90 = vector.broadcast %89 : vector<1x32xf32> to vector<8x32xf32>
    %91 = arith.addf %88, %90 : vector<8x32xf32>
    %c0_45 = arith.constant 0 : index
    %c0_46 = arith.constant 0 : index
    %c0_47 = arith.constant 0 : index
    %92 = vector.load %arg15[%c0_45, %c0_46, %c0_47] : memref<1x8x32xf32, #tpu.memory_space<vmem>>, vector<1x8x32xf32>
    %93 = vector.shape_cast %92 : vector<1x8x32xf32> to vector<8x32xf32>
    %94 = vector.shape_cast %91 : vector<8x32xf32> to vector<1x8x32xf32>
    tpu.vector_store %arg15[%c0_45, %c0_46, %c0_47], %94 {strides = array<i32>} : memref<1x8x32xf32, #tpu.memory_space<vmem>>, vector<1x8x32xf32>,
    return
  }
  func.func @transform_0(%arg0: i32, %arg1: i32) -> (i32, i32, i32) {
    %c0_i32 = arith.constant 0 : i32
    %c0_i32_0 = arith.constant 0 : i32
    return %arg0, %arg1, %c0_i32 : i32, i32, i32
  }
  func.func @transform_1(%arg0: i32, %arg1: i32) -> (i32, i32, i32) {
    %c0_i32 = arith.constant 0 : i32
    %c0_i32_0 = arith.constant 0 : i32
    %c0_i32_1 = arith.constant 0 : i32
    return %arg0, %c0_i32, %c0_i32_0 : i32, i32, i32
  }
  func.func @transform_2(%arg0: i32, %arg1: i32) -> (i32, i32, i32) {
    %c0_i32 = arith.constant 0 : i32
    %c0_i32_0 = arith.constant 0 : i32
    %c0_i32_1 = arith.constant 0 : i32
    return %arg0, %c0_i32, %c0_i32_0 : i32, i32, i32
  }
  func.func @transform_3(%arg0: i32, %arg1: i32) -> (i32, i32) {
    %c0_i32 = arith.constant 0 : i32
    %c0_i32_0 = arith.constant 0 : i32
    %c0_i32_1 = arith.constant 0 : i32
    return %c0_i32, %c0_i32_0 : i32, i32
  }
  func.func @transform_4(%arg0: i32, %arg1: i32) -> (i32, i32) {
    %c0_i32 = arith.constant 0 : i32
    %c0_i32_0 = arith.constant 0 : i32
    %c0_i32_1 = arith.constant 0 : i32
    return %c0_i32, %c0_i32_0 : i32, i32
  }
  func.func @transform_5(%arg0: i32, %arg1: i32) -> (i32, i32) {
    %c0_i32 = arith.constant 0 : i32
    %c0_i32_0 = arith.constant 0 : i32
    %c0_i32_1 = arith.constant 0 : i32
    return %c0_i32, %c0_i32_0 : i32, i32
  }
  func.func @transform_6(%arg0: i32, %arg1: i32) -> (i32, i32) {
    %c0_i32 = arith.constant 0 : i32
    %c0_i32_0 = arith.constant 0 : i32
    %c0_i32_1 = arith.constant 0 : i32
    return %c0_i32, %c0_i32_0 : i32, i32
  }
  func.func @transform_7(%arg0: i32, %arg1: i32) -> (i32, i32) {
    %c0_i32 = arith.constant 0 : i32
    %c0_i32_0 = arith.constant 0 : i32
    %c0_i32_1 = arith.constant 0 : i32
    return %c0_i32, %c0_i32_0 : i32, i32
  }
  func.func @transform_8(%arg0: i32, %arg1: i32) -> (i32, i32) {
    %c0_i32 = arith.constant 0 : i32
    %c0_i32_0 = arith.constant 0 : i32
    %c0_i32_1 = arith.constant 0 : i32
    return %c0_i32, %c0_i32_0 : i32, i32
  }
  func.func @transform_9(%arg0: i32, %arg1: i32) -> (i32, i32) {
    %c0_i32 = arith.constant 0 : i32
    %c0_i32_0 = arith.constant 0 : i32
    %c0_i32_1 = arith.constant 0 : i32
    return %c0_i32, %c0_i32_0 : i32, i32
  }
  func.func @transform_10(%arg0: i32, %arg1: i32) -> (i32, i32) {
    %c0_i32 = arith.constant 0 : i32
    %c0_i32_0 = arith.constant 0 : i32
    %c0_i32_1 = arith.constant 0 : i32
    return %c0_i32, %c0_i32_0 : i32, i32
  }
  func.func @transform_11(%arg0: i32, %arg1: i32) -> (i32, i32) {
    %c0_i32 = arith.constant 0 : i32
    %c0_i32_0 = arith.constant 0 : i32
    %c0_i32_1 = arith.constant 0 : i32
    return %c0_i32, %c0_i32_0 : i32, i32
  }
  func.func @transform_12(%arg0: i32, %arg1: i32) -> (i32, i32) {
    %c0_i32 = arith.constant 0 : i32
    %c0_i32_0 = arith.constant 0 : i32
    %c0_i32_1 = arith.constant 0 : i32
    return %c0_i32, %c0_i32_0 : i32, i32
  }
  func.func @transform_13(%arg0: i32, %arg1: i32) -> (i32, i32, i32) {
    %c0_i32 = arith.constant 0 : i32
    %c0_i32_0 = arith.constant 0 : i32
    return %arg0, %arg1, %c0_i32 : i32, i32, i32
  }
}

</mosaic_0001>

<llo_original>
// kernel: tpu_custom_call.1
$region0: #{tpu_custom_call.1}
  #allocation0 [shape = 'u32[]', space=smem, size = 0x4, offset = 0x4, fixed_abs, tag = 'smem constant byte address 0x4 - core index']
  #allocation1 [shape = 'u32[144,128]{1,0:T(1,128)}', space=vmem, size = 0x12000, scoped, tag = 'internal scratch']
  #allocation2 [shape = 'f32[4,8,8]{2,1,0:T(8,128)}', space=vmem, size = 0x4000, scoped, tag = 'scratch operand']
  #allocation3 [shape = 'f32[4,8,8]{2,1,0:T(8,128)}', space=vmem, size = 0x4000, scoped, tag = 'scratch operand']
  %s0 = inlined_call_operand.hbm [shape: f32[2,8,32], index: 0, kind: input, shape index: {}]
  %s1 = inlined_call_operand.hbm [shape: f32[2,8,32], index: 1, kind: input, shape index: {}]
  %s2 = inlined_call_operand.vmem [shape: f32[2,1,8], index: 2, kind: input, shape index: {}]
  %s3 = inlined_call_operand.hbm [shape: f32[32,32], index: 3, kind: input, shape index: {}]
  %s4 = inlined_call_operand.hbm [shape: f32[32,32], index: 4, kind: input, shape index: {}]
  %s5 = inlined_call_operand.hbm [shape: f32[32,32], index: 5, kind: input, shape index: {}]
  %s6 = inlined_call_operand.hbm [shape: f32[1,32], index: 6, kind: input, shape index: {}]
  %s7 = inlined_call_operand.hbm [shape: f32[1,32], index: 7, kind: input, shape index: {}]
  %s8 = inlined_call_operand.hbm [shape: f32[1,32], index: 8, kind: input, shape index: {}]
  %s9 = inlined_call_operand.vmem [shape: f32[32,32], index: 9, kind: input, shape index: {}]
  %s10 = inlined_call_operand.vmem [shape: f32[1,32], index: 10, kind: input, shape index: {}]
  %s11 = inlined_call_operand.vmem [shape: f32[1,32], index: 11, kind: input, shape index: {}]
  %s12 = inlined_call_operand.vmem [shape: f32[1,32], index: 12, kind: input, shape index: {}]
  %s13 = inlined_call_operand.hbm [shape: f32[2,8,32], index: 13, kind: output, shape index: {}]
  %s14 = sld [smem:[#allocation0]]
  $region121: #{tpu_custom_call.1} parent=0
    _
  %s16 = ssub.s32 1, %s14
  %s17 = scalar_select 0, %s16, %s14
  $region1: #{tpu_custom_call.1} parent=0
    #allocation4 [shape = 'u8[8192]{0}', space=vmem, size = 0x2000, scoped, tag = 'input window, operand 0']
    #allocation5 [shape = 's32[2]{0}', space=sflag, size = 0x8, scoped, tag = 'scoped memory for tpu_custom_call.1']
    #allocation6 [shape = 's32[2]{0}', space=sflag, size = 0x8, scoped, tag = 'scoped memory for tpu_custom_call.1']
    #allocation7 [shape = 'u8[8192]{0}', space=vmem, size = 0x2000, scoped, tag = 'input window, operand 1']
    #allocation8 [shape = 's32[2]{0}', space=sflag, size = 0x8, scoped, tag = 'scoped memory for tpu_custom_call.1']
    #allocation9 [shape = 'u8[16384]{0}', space=vmem, size = 0x4000, scoped, tag = 'input window, operand 3, single buffered']
    #allocation10 [shape = 'u8[16384]{0}', space=vmem, size = 0x4000, scoped, tag = 'input window, operand 4, single buffered']
    #allocation11 [shape = 's32[1]{0}', space=sflag, size = 0x4, scoped, tag = 'scoped memory for tpu_custom_call.1']
    #allocation12 [shape = 'u8[16384]{0}', space=vmem, size = 0x4000, scoped, tag = 'input window, operand 5, single buffered']
    #allocation13 [shape = 'u8[512]{0}', space=vmem, size = 0x400, scoped, tag = 'input window, operand 6, single buffered']
    #allocation14 [shape = 's32[1]{0}', space=sflag, size = 0x4, scoped, tag = 'scoped memory for tpu_custom_call.1']
    #allocation15 [shape = 'u8[512]{0}', space=vmem, size = 0x400, scoped, tag = 'input window, operand 7, single buffered']
    #allocation16 [shape = 'u8[512]{0}', space=vmem, size = 0x400, scoped, tag = 'input window, operand 8, single buffered']
    #allocation17 [shape = 's32[1]{0}', space=sflag, size = 0x4, scoped, tag = 'scoped memory for tpu_custom_call.1']
    #allocation18 [shape = 'u8[8192]{0}', space=vmem, size = 0x2000, scoped, tag = 'output window, operand 0']
    %18 = vsyncpa [#allocation5], 0
    %s19 = scalar_lea.sflag [#allocation5], 1
    %20 = vsyncpa %s19, 0
    %21 = vsyncpa [#allocation8], 0
    %s22 = scalar_lea.sflag [#allocation8], 1
    %23 = vsyncpa %s22, 0
    %24 = vsyncpa [#allocation11], 0
    %25 = vsyncpa [#allocation14], 0
    %26 = vsyncpa [#allocation17], 0
    %27 = vsyncpa [#allocation6], 0
    %s28 = scalar_lea.sflag [#allocation6], 1
    %29 = vsyncpa %s28, 0
    loop: start=0, step=1, limit=4
    $region2: #{tpu_custom_call.1} parent=1 // loop_pre_header
      _
    $region3: #{tpu_custom_call.1} parent=1 // loop_header
      %s31 = sphi 0, %s35
      %p32 = scmp.ge.s32.totalorder %s31, 4
      %s38 = sphi 0, %s50
      %s39 = sphi 0, %s46
      %s40 = sphi 0, %s38
      %s41 = sphi 0, %s39
      %s42 = sphi 0, %s40
      %s43 = sphi 0, %s41
      %s55 = sphi 0, %s57
      %s58 = sphi 0, %s55
      %s59 = sphi 0, %s58
      %s75 = sphi 0, %s59
      %s81 = sphi 0, %s83
      %s84 = sphi 0, %s81
      %s85 = sphi 0, %s84
      %s101 = sphi 0, %s85
      %s107 = sphi 0, %s109
      %s110 = sphi 0, %s107
      %s111 = sphi 0, %s110
      %s127 = sphi 0, %s111
      %s131 = sphi 0, %s131
      %s133 = sphi 0, %s131
      %s134 = sphi 0, %s133
      %s148 = sphi 0, %s134
      %s152 = sphi 0, %s152
      %s154 = sphi 0, %s152
      %s155 = sphi 0, %s154
      %s169 = sphi 0, %s155
      %s173 = sphi 0, %s173
      %s175 = sphi 0, %s173
      %s176 = sphi 0, %s175
      %s190 = sphi 0, %s176
      %s194 = sphi 0, %s194
      %s196 = sphi 0, %s194
      %s197 = sphi 0, %s196
      %s211 = sphi 0, %s197
      %s215 = sphi 0, %s215
      %s217 = sphi 0, %s215
      %s218 = sphi 0, %s217
      %s232 = sphi 0, %s218
      %s236 = sphi 0, %s236
      %s238 = sphi 0, %s236
      %s239 = sphi 0, %s238
      %s253 = sphi 0, %s239
      %s257 = sphi 0, %s257
      %s259 = sphi 0, %s257
      %s260 = sphi 0, %s259
      %s274 = sphi 0, %s260
      %s278 = sphi 0, %s278
      %s280 = sphi 0, %s278
      %s281 = sphi 0, %s280
      %s295 = sphi 0, %s281
      %s299 = sphi 0, %s299
      %s301 = sphi 0, %s299
      %s302 = sphi 0, %s301
      %s316 = sphi 0, %s302
      %s320 = sphi 0, %s320
      %s322 = sphi 0, %s320
      %s323 = sphi 0, %s322
      %s337 = sphi 0, %s323
      %s345 = sphi 0, %s347
      %s348 = sphi 0, %s345
      %s349 = sphi 0, %s348
      %s365 = sphi 0, %s349
    $region4: #{tpu_custom_call.1} parent=1 // loop_header_branch
      %34 = sbr.rel (%p32) target = $region8
    $region5: #{tpu_custom_call.1} parent=1 // loop_body
      %s36 = ssub.s32 %s31, 1
      %s37 = ssub.s32 %s31, 2
      %s44 = sadd.s32 1, %s39
      %p45 = scmp.ge.s32.totalorder %s44, 1
      %s46 = scalar_select %p45, 0, %s44
      %s47 = sadd.s32 1, %s38
      %s48 = scalar_select %p45, %s47, %s38
      %p49 = scmp.ge.s32.totalorder %s48, 2
      %s50 = scalar_select %p49, 0, %s48
      %s51 = ssub.s32 %s38, %s50
      %s52 = ssub.s32 %s39, %s46
      %s53 = sor.u32 %s51, %s52
      %p54 = scmp.eq.s32.totalorder %s53, 0
      %s56 = sadd.s32 %s55, 1
      %s57 = scalar_select %p54, %s55, %s56
      %p60 = pneg %p54
      %p61 = scmp.eq.s32.totalorder %s31, 1
      %p62 = por %p60, %p61
      %p63 = scmp.ne.s32.totalorder %s55, %s58
      %p64 = scmp.eq.s32.totalorder %s31, 0
      %p65 = por %p63, %p64
      %p66 = scmp.ne.s32.totalorder %s55, %s58
      %p67 = scmp.eq.s32.totalorder %s36, 1
      %p68 = por %p66, %p67
      %p69 = scmp.ne.s32.totalorder %s58, %s59
      %p70 = scmp.eq.s32.totalorder %s36, 0
      %p71 = por %p69, %p70
      %p72 = scmp.ne.s32.totalorder %s58, %s59
      %p73 = scmp.eq.s32.totalorder %s37, 1
      %p74 = por %p72, %p73
      %p76 = scmp.ne.s32.totalorder %s59, %s75
      %p77 = scmp.eq.s32.totalorder %s37, 0
      %p78 = por %p76, %p77
      %s79 = ssub.s32 %s38, %s50
      %p80 = scmp.eq.s32.totalorder %s79, 0
      %s82 = sadd.s32 %s81, 1
      %s83 = scalar_select %p80, %s81, %s82
      %p86 = pneg %p80
      %p87 = scmp.eq.s32.totalorder %s31, 1
      %p88 = por %p86, %p87
      %p89 = scmp.ne.s32.totalorder %s81, %s84
      %p90 = scmp.eq.s32.totalorder %s31, 0
      %p91 = por %p89, %p90
      %p92 = scmp.ne.s32.totalorder %s81, %s84
      %p93 = scmp.eq.s32.totalorder %s36, 1
      %p94 = por %p92, %p93
      %p95 = scmp.ne.s32.totalorder %s84, %s85
      %p96 = scmp.eq.s32.totalorder %s36, 0
      %p97 = por %p95, %p96
      %p98 = scmp.ne.s32.totalorder %s84, %s85
      %p99 = scmp.eq.s32.totalorder %s37, 1
      %p100 = por %p98, %p99
      %p102 = scmp.ne.s32.totalorder %s85, %s101
      %p103 = scmp.eq.s32.totalorder %s37, 0
      %p104 = por %p102, %p103
      %s105 = ssub.s32 %s38, %s50
      %p106 = scmp.eq.s32.totalorder %s105, 0
      %s108 = sadd.s32 %s107, 1
      %s109 = scalar_select %p106, %s107, %s108
      %p112 = pneg %p106
      %p113 = scmp.eq.s32.totalorder %s31, 1
      %p114 = por %p112, %p113
      %p115 = scmp.ne.s32.totalorder %s107, %s110
      %p116 = scmp.eq.s32.totalorder %s31, 0
      %p117 = por %p115, %p116
      %p118 = scmp.ne.s32.totalorder %s107, %s110
      %p119 = scmp.eq.s32.totalorder %s36, 1
      %p120 = por %p118, %p119
      %p121 = scmp.ne.s32.totalorder %s110, %s111
      %p122 = scmp.eq.s32.totalorder %s36, 0
      %p123 = por %p121, %p122
      %p124 = scmp.ne.s32.totalorder %s110, %s111
      %p125 = scmp.eq.s32.totalorder %s37, 1
      %p126 = por %p124, %p125
      %p128 = scmp.ne.s32.totalorder %s111, %s127
      %p129 = scmp.eq.s32.totalorder %s37, 0
      %p130 = por %p128, %p129
      %s132 = sadd.s32 %s131, 1
      %p135 = scmp.eq.s32.totalorder %s31, 1
      %p136 = scmp.ne.s32.totalorder %s131, %s133
      %p137 = scmp.eq.s32.totalorder %s31, 0
      %p138 = por %p136, %p137
      %p139 = scmp.ne.s32.totalorder %s131, %s133
      %p140 = scmp.eq.s32.totalorder %s36, 1
      %p141 = por %p139, %p140
      %p142 = scmp.ne.s32.totalorder %s133, %s134
      %p143 = scmp.eq.s32.totalorder %s36, 0
      %p144 = por %p142, %p143
      %p145 = scmp.ne.s32.totalorder %s133, %s134
      %p146 = scmp.eq.s32.totalorder %s37, 1
      %p147 = por %p145, %p146
      %p149 = scmp.ne.s32.totalorder %s134, %s148
      %p150 = scmp.eq.s32.totalorder %s37, 0
      %p151 = por %p149, %p150
      %s153 = sadd.s32 %s152, 1
      %p156 = scmp.eq.s32.totalorder %s31, 1
      %p157 = scmp.ne.s32.totalorder %s152, %s154
      %p158 = scmp.eq.s32.totalorder %s31, 0
      %p159 = por %p157, %p158
      %p160 = scmp.ne.s32.totalorder %s152, %s154
      %p161 = scmp.eq.s32.totalorder %s36, 1
      %p162 = por %p160, %p161
      %p163 = scmp.ne.s32.totalorder %s154, %s155
      %p164 = scmp.eq.s32.totalorder %s36, 0
      %p165 = por %p163, %p164
      %p166 = scmp.ne.s32.totalorder %s154, %s155
      %p167 = scmp.eq.s32.totalorder %s37, 1
      %p168 = por %p166, %p167
      %p170 = scmp.ne.s32.totalorder %s155, %s169
      %p171 = scmp.eq.s32.totalorder %s37, 0
      %p172 = por %p170, %p171
      %s174 = sadd.s32 %s173, 1
      %p177 = scmp.eq.s32.totalorder %s31, 1
      %p178 = scmp.ne.s32.totalorder %s173, %s175
      %p179 = scmp.eq.s32.totalorder %s31, 0
      %p180 = por %p178, %p179
      %p181 = scmp.ne.s32.totalorder %s173, %s175
      %p182 = scmp.eq.s32.totalorder %s36, 1
      %p183 = por %p181, %p182
      %p184 = scmp.ne.s32.totalorder %s175, %s176
      %p185 = scmp.eq.s32.totalorder %s36, 0
      %p186 = por %p184, %p185
      %p187 = scmp.ne.s32.totalorder %s175, %s176
      %p188 = scmp.eq.s32.totalorder %s37, 1
      %p189 = por %p187, %p188
      %p191 = scmp.ne.s32.totalorder %s176, %s190
      %p192 = scmp.eq.s32.totalorder %s37, 0
      %p193 = por %p191, %p192
      %s195 = sadd.s32 %s194, 1
      %p198 = scmp.eq.s32.totalorder %s31, 1
      %p199 = scmp.ne.s32.totalorder %s194, %s196
      %p200 = scmp.eq.s32.totalorder %s31, 0
      %p201 = por %p199, %p200
      %p202 = scmp.ne.s32.totalorder %s194, %s196
      %p203 = scmp.eq.s32.totalorder %s36, 1
      %p204 = por %p202, %p203
      %p205 = scmp.ne.s32.totalorder %s196, %s197
      %p206 = scmp.eq.s32.totalorder %s36, 0
      %p207 = por %p205, %p206
      %p208 = scmp.ne.s32.totalorder %s196, %s197
      %p209 = scmp.eq.s32.totalorder %s37, 1
      %p210 = por %p208, %p209
      %p212 = scmp.ne.s32.totalorder %s197, %s211
      %p213 = scmp.eq.s32.totalorder %s37, 0
      %p214 = por %p212, %p213
      %s216 = sadd.s32 %s215, 1
      %p219 = scmp.eq.s32.totalorder %s31, 1
      %p220 = scmp.ne.s32.totalorder %s215, %s217
      %p221 = scmp.eq.s32.totalorder %s31, 0
      %p222 = por %p220, %p221
      %p223 = scmp.ne.s32.totalorder %s215, %s217
      %p224 = scmp.eq.s32.totalorder %s36, 1
      %p225 = por %p223, %p224
      %p226 = scmp.ne.s32.totalorder %s217, %s218
      %p227 = scmp.eq.s32.totalorder %s36, 0
      %p228 = por %p226, %p227
      %p229 = scmp.ne.s32.totalorder %s217, %s218
      %p230 = scmp.eq.s32.totalorder %s37, 1
      %p231 = por %p229, %p230
      %p233 = scmp.ne.s32.totalorder %s218, %s232
      %p234 = scmp.eq.s32.totalorder %s37, 0
      %p235 = por %p233, %p234
      %s237 = sadd.s32 %s236, 1
      %p240 = scmp.eq.s32.totalorder %s31, 1
      %p241 = scmp.ne.s32.totalorder %s236, %s238
      %p242 = scmp.eq.s32.totalorder %s31, 0
      %p243 = por %p241, %p242
      %p244 = scmp.ne.s32.totalorder %s236, %s238
      %p245 = scmp.eq.s32.totalorder %s36, 1
      %p246 = por %p244, %p245
      %p247 = scmp.ne.s32.totalorder %s238, %s239
      %p248 = scmp.eq.s32.totalorder %s36, 0
      %p249 = por %p247, %p248
      %p250 = scmp.ne.s32.totalorder %s238, %s239
      %p251 = scmp.eq.s32.totalorder %s37, 1
      %p252 = por %p250, %p251
      %p254 = scmp.ne.s32.totalorder %s239, %s253
      %p255 = scmp.eq.s32.totalorder %s37, 0
      %p256 = por %p254, %p255
      %s258 = sadd.s32 %s257, 1
      %p261 = scmp.eq.s32.totalorder %s31, 1
      %p262 = scmp.ne.s32.totalorder %s257, %s259
      %p263 = scmp.eq.s32.totalorder %s31, 0
      %p264 = por %p262, %p263
      %p265 = scmp.ne.s32.totalorder %s257, %s259
      %p266 = scmp.eq.s32.totalorder %s36, 1
      %p267 = por %p265, %p266
      %p268 = scmp.ne.s32.totalorder %s259, %s260
      %p269 = scmp.eq.s32.totalorder %s36, 0
      %p270 = por %p268, %p269
      %p271 = scmp.ne.s32.totalorder %s259, %s260
      %p272 = scmp.eq.s32.totalorder %s37, 1
      %p273 = por %p271, %p272
      %p275 = scmp.ne.s32.totalorder %s260, %s274
      %p276 = scmp.eq.s32.totalorder %s37, 0
      %p277 = por %p275, %p276
      %s279 = sadd.s32 %s278, 1
      %p282 = scmp.eq.s32.totalorder %s31, 1
      %p283 = scmp.ne.s32.totalorder %s278, %s280
      %p284 = scmp.eq.s32.totalorder %s31, 0
      %p285 = por %p283, %p284
      %p286 = scmp.ne.s32.totalorder %s278, %s280
      %p287 = scmp.eq.s32.totalorder %s36, 1
      %p288 = por %p286, %p287
      %p289 = scmp.ne.s32.totalorder %s280, %s281
      %p290 = scmp.eq.s32.totalorder %s36, 0
      %p291 = por %p289, %p290
      %p292 = scmp.ne.s32.totalorder %s280, %s281
      %p293 = scmp.eq.s32.totalorder %s37, 1
      %p294 = por %p292, %p293
      %p296 = scmp.ne.s32.totalorder %s281, %s295
      %p297 = scmp.eq.s32.totalorder %s37, 0
      %p298 = por %p296, %p297
      %s300 = sadd.s32 %s299, 1
      %p303 = scmp.eq.s32.totalorder %s31, 1
      %p304 = scmp.ne.s32.totalorder %s299, %s301
      %p305 = scmp.eq.s32.totalorder %s31, 0
      %p306 = por %p304, %p305
      %p307 = scmp.ne.s32.totalorder %s299, %s301
      %p308 = scmp.eq.s32.totalorder %s36, 1
      %p309 = por %p307, %p308
      %p310 = scmp.ne.s32.totalorder %s301, %s302
      %p311 = scmp.eq.s32.totalorder %s36, 0
      %p312 = por %p310, %p311
      %p313 = scmp.ne.s32.totalorder %s301, %s302
      %p314 = scmp.eq.s32.totalorder %s37, 1
      %p315 = por %p313, %p314
      %p317 = scmp.ne.s32.totalorder %s302, %s316
      %p318 = scmp.eq.s32.totalorder %s37, 0
      %p319 = por %p317, %p318
      %s321 = sadd.s32 %s320, 1
      %p324 = scmp.eq.s32.totalorder %s31, 1
      %p325 = scmp.ne.s32.totalorder %s320, %s322
      %p326 = scmp.eq.s32.totalorder %s31, 0
      %p327 = por %p325, %p326
      %p328 = scmp.ne.s32.totalorder %s320, %s322
      %p329 = scmp.eq.s32.totalorder %s36, 1
      %p330 = por %p328, %p329
      %p331 = scmp.ne.s32.totalorder %s322, %s323
      %p332 = scmp.eq.s32.totalorder %s36, 0
      %p333 = por %p331, %p332
      %p334 = scmp.ne.s32.totalorder %s322, %s323
      %p335 = scmp.eq.s32.totalorder %s37, 1
      %p336 = por %p334, %p335
      %p338 = scmp.ne.s32.totalorder %s323, %s337
      %p339 = scmp.eq.s32.totalorder %s37, 0
      %p340 = por %p338, %p339
      %s341 = ssub.s32 %s38, %s50
      %s342 = ssub.s32 %s39, %s46
      %s343 = sor.u32 %s341, %s342
      %p344 = scmp.eq.s32.totalorder %s343, 0
      %s346 = sadd.s32 %s345, 1
      %s347 = scalar_select %p344, %s345, %s346
      %p350 = pneg %p344
      %p351 = scmp.eq.s32.totalorder %s31, 1
      %p352 = por %p350, %p351
      %p353 = scmp.ne.s32.totalorder %s345, %s348
      %p354 = scmp.eq.s32.totalorder %s31, 0
      %p355 = por %p353, %p354
      %p356 = scmp.ne.s32.totalorder %s345, %s348
      %p357 = scmp.eq.s32.totalorder %s36, 1
      %p358 = por %p356, %p357
      %p359 = scmp.ne.s32.totalorder %s348, %s349
      %p360 = scmp.eq.s32.totalorder %s36, 0
      %p361 = por %p359, %p360
      %p362 = scmp.ne.s32.totalorder %s348, %s349
      %p363 = scmp.eq.s32.totalorder %s37, 1
      %p364 = por %p362, %p363
      %p366 = scmp.ne.s32.totalorder %s349, %s365
      %p367 = scmp.eq.s32.totalorder %s37, 0
      %p368 = por %p366, %p367
      %p369 = scmp.le.s32.totalorder 1, %s31
      %p370 = scmp.lt.s32.totalorder %s31, 3
      %p371 = pnand %p369, %p370
      %p372 = pneg %p371
      // Predicated region
      $region9: #{tpu_custom_call.1} parent=5 // pred_check
        _
      $region10: #{tpu_custom_call.1} parent=5 // pred_check_branch
        %374 = sbr.rel (%p371) target = $region12
      $region11: #{tpu_custom_call.1} parent=5 // pred_region
        %s375 = ssub.s32 %s31, 1
        // Predicated region
        $region13: #{tpu_custom_call.1} parent=11 // pred_check
          %p376 = pneg %p144
        $region14: #{tpu_custom_call.1} parent=11 // pred_check_branch
          %378 = sbr.rel (%p376) target = $region16
        $region15: #{tpu_custom_call.1} parent=11 // pred_region
          %s380 = ssub.s32 512, 512
          %381 = vsyncadd [#allocation8], %s380
          %s382 = sshll.u32 [#allocation9], 4
          %s383 = int_to_ptr.vmem [resolvable:$true] %s382
          %388 = dma.hbm_to_vmem [thread:$0]  %s3, 512, %s383, [#allocation8], 128, 128, 8
        $region16: #{tpu_custom_call.1} parent=11 // pred_fallthru
          _
        // Predicated region
        $region17: #{tpu_custom_call.1} parent=11 // pred_check
          %p389 = pneg %p165
        $region18: #{tpu_custom_call.1} parent=11 // pred_check_branch
          %391 = sbr.rel (%p389) target = $region20
        $region19: #{tpu_custom_call.1} parent=11 // pred_region
          %s393 = ssub.s32 512, 512
          %394 = vsyncadd [#allocation11], %s393
          %s395 = sshll.u32 [#allocation10], 4
          %s396 = int_to_ptr.vmem [resolvable:$true] %s395
          %401 = dma.hbm_to_vmem [thread:$0]  %s4, 512, %s396, [#allocation11], 128, 128, 8
        $region20: #{tpu_custom_call.1} parent=11 // pred_fallthru
          _
        // Predicated region
        $region21: #{tpu_custom_call.1} parent=11 // pred_check
          %p402 = pneg %p186
        $region22: #{tpu_custom_call.1} parent=11 // pred_check_branch
          %404 = sbr.rel (%p402) target = $region24
        $region23: #{tpu_custom_call.1} parent=11 // pred_region
          %s406 = ssub.s32 512, 512
          %407 = vsyncadd [#allocation11], %s406
          %s408 = sshll.u32 [#allocation12], 4
          %s409 = int_to_ptr.vmem [resolvable:$true] %s408
          %414 = dma.hbm_to_vmem [thread:$0]  %s5, 512, %s409, [#allocation11], 128, 128, 8
        $region24: #{tpu_custom_call.1} parent=11 // pred_fallthru
          _
        // Predicated region
        $region25: #{tpu_custom_call.1} parent=11 // pred_check
          %p415 = pneg %p207
        $region26: #{tpu_custom_call.1} parent=11 // pred_check_branch
          %417 = sbr.rel (%p415) target = $region28
        $region27: #{tpu_custom_call.1} parent=11 // pred_region
          %s419 = ssub.s32 16, 16
          %420 = vsyncadd [#allocation14], %s419
          %s422 = sshll.u32 [#allocation13], 4
          %s423 = int_to_ptr.vmem [resolvable:$true] %s422
          %425 = dma.hbm_to_vmem [thread:$0]  %s6, 16, %s423, [#allocation14]
        $region28: #{tpu_custom_call.1} parent=11 // pred_fallthru
          _
        // Predicated region
        $region29: #{tpu_custom_call.1} parent=11 // pred_check
          %p426 = pneg %p228
        $region30: #{tpu_custom_call.1} parent=11 // pred_check_branch
          %428 = sbr.rel (%p426) target = $region32
        $region31: #{tpu_custom_call.1} parent=11 // pred_region
          %s430 = ssub.s32 16, 16
          %431 = vsyncadd [#allocation14], %s430
          %s433 = sshll.u32 [#allocation15], 4
          %s434 = int_to_ptr.vmem [resolvable:$true] %s433
          %436 = dma.hbm_to_vmem [thread:$0]  %s7, 16, %s434, [#allocation14]
        $region32: #{tpu_custom_call.1} parent=11 // pred_fallthru
          _
        // Predicated region
        $region33: #{tpu_custom_call.1} parent=11 // pred_check
          %p437 = pneg %p249
        $region34: #{tpu_custom_call.1} parent=11 // pred_check_branch
          %439 = sbr.rel (%p437) target = $region36
        $region35: #{tpu_custom_call.1} parent=11 // pred_region
          %s441 = ssub.s32 16, 16
          %442 = vsyncadd [#allocation17], %s441
          %s444 = sshll.u32 [#allocation16], 4
          %s445 = int_to_ptr.vmem [resolvable:$true] %s444
          %447 = dma.hbm_to_vmem [thread:$0]  %s8, 16, %s445, [#allocation17]
        $region36: #{tpu_custom_call.1} parent=11 // pred_fallthru
          _
        // Predicated region
        $region37: #{tpu_custom_call.1} parent=11 // pred_check
          %p448 = pneg %p270
        $region38: #{tpu_custom_call.1} parent=11 // pred_check_branch
          %450 = sbr.rel (%p448) target = $region40
        $region39: #{tpu_custom_call.1} parent=11 // pred_region
          _
        $region40: #{tpu_custom_call.1} parent=11 // pred_fallthru
          _
        // Predicated region
        $region41: #{tpu_custom_call.1} parent=11 // pred_check
          %p451 = pneg %p291
        $region42: #{tpu_custom_call.1} parent=11 // pred_check_branch
          %453 = sbr.rel (%p451) target = $region44
        $region43: #{tpu_custom_call.1} parent=11 // pred_region
          _
        $region44: #{tpu_custom_call.1} parent=11 // pred_fallthru
          _
        // Predicated region
        $region45: #{tpu_custom_call.1} parent=11 // pred_check
          %p454 = pneg %p312
        $region46: #{tpu_custom_call.1} parent=11 // pred_check_branch
          %456 = sbr.rel (%p454) target = $region48
        $region47: #{tpu_custom_call.1} parent=11 // pred_region
          _
        $region48: #{tpu_custom_call.1} parent=11 // pred_fallthru
          _
        // Predicated region
        $region49: #{tpu_custom_call.1} parent=11 // pred_check
          %p457 = pneg %p333
        $region50: #{tpu_custom_call.1} parent=11 // pred_check_branch
          %459 = sbr.rel (%p457) target = $region52
        $region51: #{tpu_custom_call.1} parent=11 // pred_region
          _
        $region52: #{tpu_custom_call.1} parent=11 // pred_fallthru
          _
      $region12: #{tpu_custom_call.1} parent=5 // pred_fallthru
        _
      %p460 = scmp.lt.s32.totalorder %s31, 2
      // Predicated region
      $region53: #{tpu_custom_call.1} parent=5 // pred_check
        %p461 = pneg %p460
      $region54: #{tpu_custom_call.1} parent=5 // pred_check_branch
        %463 = sbr.rel (%p461) target = $region56
      $region55: #{tpu_custom_call.1} parent=5 // pred_region
        // Predicated region
        $region57: #{tpu_custom_call.1} parent=55 // pred_check
          %p464 = pneg %p65
        $region58: #{tpu_custom_call.1} parent=55 // pred_check_branch
          %466 = sbr.rel (%p464) target = $region60
        $region59: #{tpu_custom_call.1} parent=55 // pred_region
          %s467 = sand.u32 %s55, 1
          %s468 = scalar_lea.sflag [#allocation5], %s467
          %s469 = sand.u32 %s55, 1
          %s470 = smul.addr %s469, 8
          %s471 = scalar_lea.vmem [#allocation4], %s470
          %s473 = ssub.s32 128, 128
          %474 = vsyncadd %s468, %s473
          %s475 = sadd.s32 %s39, %s38
          %s476 = smul.addr %s475, 128
          %s477 = scalar_lea.hbm %s0, %s476
          %s479 = sshll.u32 %s471, 4
          %s480 = int_to_ptr.vmem [resolvable:$true] %s479
          %482 = dma.hbm_to_vmem [thread:$0]  %s477, 128, %s480, %s468
        $region60: #{tpu_custom_call.1} parent=55 // pred_fallthru
          _
        // Predicated region
        $region61: #{tpu_custom_call.1} parent=55 // pred_check
          %p483 = pneg %p91
        $region62: #{tpu_custom_call.1} parent=55 // pred_check_branch
          %485 = sbr.rel (%p483) target = $region64
        $region63: #{tpu_custom_call.1} parent=55 // pred_region
          %s486 = sand.u32 %s31, 1
          %s487 = scalar_lea.sflag [#allocation8], %s486
          %s488 = sand.u32 %s81, 1
          %s489 = smul.addr %s488, 8
          %s490 = scalar_lea.vmem [#allocation7], %s489
          %s492 = ssub.s32 128, 128
          %493 = vsyncadd %s487, %s492
          %s494 = smul.addr %s38, 128
          %s495 = scalar_lea.hbm %s1, %s494
          %s497 = sshll.u32 %s490, 4
          %s498 = int_to_ptr.vmem [resolvable:$true] %s497
          %500 = dma.hbm_to_vmem [thread:$0]  %s495, 128, %s498, %s487
        $region64: #{tpu_custom_call.1} parent=55 // pred_fallthru
          _
        // Predicated region
        $region65: #{tpu_custom_call.1} parent=55 // pred_check
          %p501 = pneg %p117
        $region66: #{tpu_custom_call.1} parent=55 // pred_check_branch
          %503 = sbr.rel (%p501) target = $region68
        $region67: #{tpu_custom_call.1} parent=55 // pred_region
          %p504 = scmp.lt.s32.totalorder %s38, 1
          %s505 = scalar_select %p504, %s38, 1
          %s506 = scalar_lea.vmem %s2, %s505
        $region68: #{tpu_custom_call.1} parent=55 // pred_fallthru
          _
      $region56: #{tpu_custom_call.1} parent=5 // pred_fallthru
        _
      %p507 = scmp.le.s32.totalorder 1, %s31
      %p508 = scmp.lt.s32.totalorder %s31, 3
      %p509 = pnand %p507, %p508
      %p510 = pneg %p509
      // Predicated region
      $region69: #{tpu_custom_call.1} parent=5 // pred_check
        _
      $region70: #{tpu_custom_call.1} parent=5 // pred_check_branch
        %512 = sbr.rel (%p509) target = $region72
      $region71: #{tpu_custom_call.1} parent=5 // pred_region
        %s513 = ssub.s32 %s31, 1
        %s514 = sand.u32 %s58, 1
        %s515 = scalar_lea.sflag [#allocation5], %s514
        %s516 = sand.u32 %s58, 1
        %s517 = smul.addr %s516, 8
        %s518 = scalar_lea.vmem [#allocation4], %s517
        // Predicated region
        $region73: #{tpu_custom_call.1} parent=71 // pred_check
          %p519 = pneg %p71
        $region74: #{tpu_custom_call.1} parent=71 // pred_check_branch
          %521 = sbr.rel (%p519) target = $region76
        $region75: #{tpu_custom_call.1} parent=71 // pred_region
          %522 = dma.done %s515, 128
        $region76: #{tpu_custom_call.1} parent=71 // pred_fallthru
          _
        %s523 = sand.u32 %s36, 1
        %s524 = scalar_lea.sflag [#allocation8], %s523
        %s525 = sand.u32 %s84, 1
        %s526 = smul.addr %s525, 8
        %s527 = scalar_lea.vmem [#allocation7], %s526
        // Predicated region
        $region77: #{tpu_custom_call.1} parent=71 // pred_check
          %p528 = pneg %p97
        $region78: #{tpu_custom_call.1} parent=71 // pred_check_branch
          %530 = sbr.rel (%p528) target = $region80
        $region79: #{tpu_custom_call.1} parent=71 // pred_region
          %531 = dma.done %s524, 128
        $region80: #{tpu_custom_call.1} parent=71 // pred_fallthru
          _
        // Predicated region
        $region81: #{tpu_custom_call.1} parent=71 // pred_check
          %p532 = pneg %p144
        $region82: #{tpu_custom_call.1} parent=71 // pred_check_branch
          %534 = sbr.rel (%p532) target = $region84
        $region83: #{tpu_custom_call.1} parent=71 // pred_region
          %535 = dma.done [#allocation8], 512
        $region84: #{tpu_custom_call.1} parent=71 // pred_fallthru
          _
        // Predicated region
        $region85: #{tpu_custom_call.1} parent=71 // pred_check
          %p536 = pneg %p165
        $region86: #{tpu_custom_call.1} parent=71 // pred_check_branch
          %538 = sbr.rel (%p536) target = $region88
        $region87: #{tpu_custom_call.1} parent=71 // pred_region
          %539 = dma.done [#allocation11], 512
        $region88: #{tpu_custom_call.1} parent=71 // pred_fallthru
          _
        // Predicated region
        $region89: #{tpu_custom_call.1} parent=71 // pred_check
          %p540 = pneg %p186
        $region90: #{tpu_custom_call.1} parent=71 // pred_check_branch
          %542 = sbr.rel (%p540) target = $region92
        $region91: #{tpu_custom_call.1} parent=71 // pred_region
          %543 = dma.done [#allocation11], 512
        $region92: #{tpu_custom_call.1} parent=71 // pred_fallthru
          _
        // Predicated region
        $region93: #{tpu_custom_call.1} parent=71 // pred_check
          %p544 = pneg %p207
        $region94: #{tpu_custom_call.1} parent=71 // pred_check_branch
          %546 = sbr.rel (%p544) target = $region96
        $region95: #{tpu_custom_call.1} parent=71 // pred_region
          %547 = dma.done [#allocation14], 16
        $region96: #{tpu_custom_call.1} parent=71 // pred_fallthru
          _
        // Predicated region
        $region97: #{tpu_custom_call.1} parent=71 // pred_check
          %p548 = pneg %p228
        $region98: #{tpu_custom_call.1} parent=71 // pred_check_branch
          %550 = sbr.rel (%p548) target = $region100
        $region99: #{tpu_custom_call.1} parent=71 // pred_region
          %551 = dma.done [#allocation14], 16
        $region100: #{tpu_custom_call.1} parent=71 // pred_fallthru
          _
        // Predicated region
        $region101: #{tpu_custom_call.1} parent=71 // pred_check
          %p552 = pneg %p249
        $region102: #{tpu_custom_call.1} parent=71 // pred_check_branch
          %554 = sbr.rel (%p552) target = $region104
        $region103: #{tpu_custom_call.1} parent=71 // pred_region
          %555 = dma.done [#allocation17], 16
        $region104: #{tpu_custom_call.1} parent=71 // pred_fallthru
          _
        %s556 = sand.u32 %s58, 1
        %s557 = scalar_lea.sflag [#allocation5], %s556
        %s558 = sand.u32 %s58, 1
        %s559 = smul.addr %s558, 8
        %s560 = scalar_lea.vmem [#allocation4], %s559
        %p561 = pneg %p71
        %p562 = pneg %p68
        %s563 = sand.u32 %s36, 1
        %s564 = scalar_lea.sflag [#allocation8], %s563
        %s565 = sand.u32 %s84, 1
        %s566 = smul.addr %s565, 8
        %s567 = scalar_lea.vmem [#allocation7], %s566
        %p568 = pneg %p97
        %p569 = pneg %p94
        %p570 = scmp.lt.s32.totalorder %s40, 1
        %s571 = scalar_select %p570, %s40, 1
        %s572 = scalar_lea.vmem %s2, %s571
        %p573 = pneg %p123
        %p574 = pneg %p120
        %p575 = pneg %p144
        %p576 = pneg %p141
        %p577 = pneg %p165
        %p578 = pneg %p162
        %p579 = pneg %p186
        %p580 = pneg %p183
        %p581 = pneg %p207
        %p582 = pneg %p204
        %p583 = pneg %p228
        %p584 = pneg %p225
        %p585 = pneg %p249
        %p586 = pneg %p246
        %p587 = pneg %p270
        %p588 = pneg %p267
        %p589 = pneg %p291
        %p590 = pneg %p288
        %p591 = pneg %p312
        %p592 = pneg %p309
        %p593 = pneg %p333
        %p594 = pneg %p330
        %p595 = pneg %p361
        %p596 = pneg %p358
        %s597 = sand.u32 %s348, 1
        %s598 = scalar_lea.sflag [#allocation6], %s597
        %s599 = sand.u32 %s348, 1
        %s600 = smul.addr %s599, 8
        %s601 = scalar_lea.vmem [#allocation18], %s600
        %p602 = scmp.lt.s32.totalorder %s40, 1
        %s603 = scalar_select %p602, %s40, 1
        %s604 = scalar_lea.vmem %s2, %s603
        %p605 = scmp.eq.s32.totalorder %s41, 0
        // Predicated region
        $region105: #{tpu_custom_call.1} parent=71 // pred_check
          %p606 = pneg %p605
        $region106: #{tpu_custom_call.1} parent=71 // pred_check_branch
          %608 = sbr.rel (%p606) target = $region108
        $region107: #{tpu_custom_call.1} parent=71 // pred_region
          %v609 = vld [vmem:[%s527] sm:$0xff]
          %v610 = vld [vmem:[#allocation10] sm:$0xff]
          %v611 = vld [vmem:[#allocation10 + $0x8] sm:$0xff]
          %v612 = vld [vmem:[#allocation10 + $0x10] sm:$0xff]
          %v613 = vld [vmem:[#allocation10 + $0x18] sm:$0xff]
          %v614 = vld [vmem:[#allocation15] sm:$0x1]
          %v616 = vlaneseq
          %v617 = vshrl.u32 %v616, 7
          %v618 = vsub.s32 0, %v617
          %v619 = vrot.slane %v614, %v618
          %vm621 = vcmask 261120
          %v623 = vsel %vm621, %v609, 0
          %625 = vmatprep.subr.mxu0 0.0
          %626 = vmatpush1.msra.mxu0 %v610
          %627 = vmatprep.subr.mxu0 0.0
          %628 = vmatpush1.msra.mxu0 %v611
          %629 = vmatprep.subr.mxu0 0.0
          %630 = vmatpush1.msra.mxu0 %v612
          %631 = vmatprep.subr.mxu0 0.0
          %632 = vmatpush1.msra.mxu0 %v613
          %633 = vmatprep.subr.mxu0 0.0
          %634 = vmatpush1.msra.mxu0 0.0
          %635 = vmatprep.subr.mxu0 0.0
          %636 = vmatpush1.msra.mxu0 0.0
          %637 = vmatprep.subr.mxu0 0.0
          %638 = vmatpush1.msra.mxu0 0.0
          %639 = vmatprep.subr.mxu0 0.0
          %640 = vmatpush1.msra.mxu0 0.0
          %641 = vmatprep.subr.mxu0 0.0
          %642 = vmatpush1.msra.mxu0 0.0
          %643 = vmatprep.subr.mxu0 0.0
          %644 = vmatpush1.msra.mxu0 0.0
          %645 = vmatprep.subr.mxu0 0.0
          %646 = vmatpush1.msra.mxu0 0.0
          %647 = vmatprep.subr.mxu0 0.0
          %648 = vmatpush1.msra.mxu0 0.0
          %649 = vmatprep.subr.mxu0 0.0
          %650 = vmatpush1.msra.mxu0 0.0
          %651 = vmatprep.subr.mxu0 0.0
          %652 = vmatpush1.msra.mxu0 0.0
          %653 = vmatprep.subr.mxu0 0.0
          %654 = vmatpush1.msra.mxu0 0.0
          %655 = vmatprep.subr.mxu0 0.0
          %656 = vmatpush1.msra.mxu0 0.0
          %657 = vmatprep.subr.mxu0 0.0
          %658 = vmatpush1.msra.mxu0 0.0
          %659 = vmatprep.subr.mxu0 0.0
          %660 = vmatpush1.msra.mxu0 0.0
          %661 = vmatprep.subr.mxu0 0.0
          %662 = vmatpush1.msra.mxu0 0.0
          %663 = vmatprep.subr.mxu0 0.0
          %664 = vmatpush1.msra.mxu0 0.0
          %665 = vmatprep.subr.mxu0 0.0
          %666 = vmatpush1.msra.mxu0 0.0
          %667 = vmatprep.subr.mxu0 0.0
          %668 = vmatpush1.msra.mxu0 0.0
          %669 = vmatprep.subr.mxu0 0.0
          %670 = vmatpush1.msra.mxu0 0.0
          %671 = vmatprep.subr.mxu0 0.0
          %672 = vmatpush1.msra.mxu0 0.0
          %673 = vmatprep.subr.mxu0 0.0
          %674 = vmatpush1.msra.mxu0 0.0
          %675 = vmatprep.subr.mxu0 0.0
          %676 = vmatpush1.msra.mxu0 0.0
          %677 = vmatprep.subr.mxu0 0.0
          %678 = vmatpush1.msra.mxu0 0.0
          %679 = vmatprep.subr.mxu0 0.0
          %680 = vmatpush1.msra.mxu0 0.0
          %681 = vmatprep.subr.mxu0 0.0
          %682 = vmatpush1.msra.mxu0 0.0
          %683 = vmatprep.subr.mxu0 0.0
          %684 = vmatpush1.msra.mxu0 0.0
          %685 = vmatprep.subr.mxu0 0.0
          %686 = vmatpush1.msra.mxu0 0.0
          %687 = vmatprep.subr.mxu0 0.0
          %688 = vmatpush1.msra.mxu0 0.0
          %689 = vmatprep.mubr.f32.mxu0 0.0
          %690 = vmatmul.mubr.f32.gmra.mrb[0].mxu0 %v623
          %v691 = vpop.f32.mrb[0].mxu0
          %v692 = vadd.f32 %v619, %v691
          %v693 = vpop.f32.mrb[0].mxu0
          %694 = vdwg.mxu0
          %v695 = vld [vmem:[#allocation12] sm:$0xff]
          %v696 = vld [vmem:[#allocation12 + $0x8] sm:$0xff]
          %v697 = vld [vmem:[#allocation12 + $0x10] sm:$0xff]
          %v698 = vld [vmem:[#allocation12 + $0x18] sm:$0xff]
          %v699 = vld [vmem:[#allocation16] sm:$0x1]
          %v701 = vlaneseq
          %v702 = vshrl.u32 %v701, 7
          %v703 = vsub.s32 0, %v702
          %v704 = vrot.slane %v699, %v703
          %706 = vmatprep.subr.mxu0 0.0
          %707 = vmatpush1.msra.mxu0 %v695
          %708 = vmatprep.subr.mxu0 0.0
          %709 = vmatpush1.msra.mxu0 %v696
          %710 = vmatprep.subr.mxu0 0.0
          %711 = vmatpush1.msra.mxu0 %v697
          %712 = vmatprep.subr.mxu0 0.0
          %713 = vmatpush1.msra.mxu0 %v698
          %714 = vmatprep.subr.mxu0 0.0
          %715 = vmatpush1.msra.mxu0 0.0
          %716 = vmatprep.subr.mxu0 0.0
          %717 = vmatpush1.msra.mxu0 0.0
          %718 = vmatprep.subr.mxu0 0.0
          %719 = vmatpush1.msra.mxu0 0.0
          %720 = vmatprep.subr.mxu0 0.0
          %721 = vmatpush1.msra.mxu0 0.0
          %722 = vmatprep.subr.mxu0 0.0
          %723 = vmatpush1.msra.mxu0 0.0
          %724 = vmatprep.subr.mxu0 0.0
          %725 = vmatpush1.msra.mxu0 0.0
          %726 = vmatprep.subr.mxu0 0.0
          %727 = vmatpush1.msra.mxu0 0.0
          %728 = vmatprep.subr.mxu0 0.0
          %729 = vmatpush1.msra.mxu0 0.0
          %730 = vmatprep.subr.mxu0 0.0
          %731 = vmatpush1.msra.mxu0 0.0
          %732 = vmatprep.subr.mxu0 0.0
          %733 = vmatpush1.msra.mxu0 0.0
          %734 = vmatprep.subr.mxu0 0.0
          %735 = vmatpush1.msra.mxu0 0.0
          %736 = vmatprep.subr.mxu0 0.0
          %737 = vmatpush1.msra.mxu0 0.0
          %738 = vmatprep.subr.mxu0 0.0
          %739 = vmatpush1.msra.mxu0 0.0
          %740 = vmatprep.subr.mxu0 0.0
          %741 = vmatpush1.msra.mxu0 0.0
          %742 = vmatprep.subr.mxu0 0.0
          %743 = vmatpush1.msra.mxu0 0.0
          %744 = vmatprep.subr.mxu0 0.0
          %745 = vmatpush1.msra.mxu0 0.0
          %746 = vmatprep.subr.mxu0 0.0
          %747 = vmatpush1.msra.mxu0 0.0
          %748 = vmatprep.subr.mxu0 0.0
          %749 = vmatpush1.msra.mxu0 0.0
          %750 = vmatprep.subr.mxu0 0.0
          %751 = vmatpush1.msra.mxu0 0.0
          %752 = vmatprep.subr.mxu0 0.0
          %753 = vmatpush1.msra.mxu0 0.0
          %754 = vmatprep.subr.mxu0 0.0
          %755 = vmatpush1.msra.mxu0 0.0
          %756 = vmatprep.subr.mxu0 0.0
          %757 = vmatpush1.msra.mxu0 0.0
          %758 = vmatprep.subr.mxu0 0.0
          %759 = vmatpush1.msra.mxu0 0.0
          %760 = vmatprep.subr.mxu0 0.0
          %761 = vmatpush1.msra.mxu0 0.0
          %762 = vmatprep.subr.mxu0 0.0
          %763 = vmatpush1.msra.mxu0 0.0
          %764 = vmatprep.subr.mxu0 0.0
          %765 = vmatpush1.msra.mxu0 0.0
          %766 = vmatprep.subr.mxu0 0.0
          %767 = vmatpush1.msra.mxu0 0.0
          %768 = vmatprep.subr.mxu0 0.0
          %769 = vmatpush1.msra.mxu0 0.0
          %770 = vmatprep.mubr.f32.mxu0 0.0
          %771 = vmatmul.mubr.f32.gmra.mrb[0].mxu0 %v623
          %v772 = vpop.f32.mrb[0].mxu0
          %v773 = vadd.f32 %v704, %v772
          %v774 = vpop.f32.mrb[0].mxu0
          %775 = vdwg.mxu0
          %777 = vrot.lane.b32.xlu0 %v692, 120
          %v778 = vpop.permute.xlu0 %777
          %780 = vrot.lane.b32.xlu0 %v692, 112
          %v781 = vpop.permute.xlu0 %780
          %783 = vrot.lane.b32.xlu0 %v692, 104
          %v784 = vpop.permute.xlu0 %783
          %vm786 = vcmask 64512
          %787 = vst.msk [vmem:[#allocation2] sm:$0xff] %vm786, %v692
          %788 = vst.msk [vmem:[#allocation2 + $0x8] sm:$0xff] %vm786, %v778
          %789 = vst.msk [vmem:[#allocation2 + $0x10] sm:$0xff] %vm786, %v781
          %790 = vst.msk [vmem:[#allocation2 + $0x18] sm:$0xff] %vm786, %v784
          %792 = vrot.lane.b32.xlu0 %v773, 120
          %v793 = vpop.permute.xlu0 %792
          %795 = vrot.lane.b32.xlu0 %v773, 112
          %v796 = vpop.permute.xlu0 %795
          %798 = vrot.lane.b32.xlu0 %v773, 104
          %v799 = vpop.permute.xlu0 %798
          %801 = vst.msk [vmem:[#allocation3] sm:$0xff] %vm786, %v773
          %802 = vst.msk [vmem:[#allocation3 + $0x8] sm:$0xff] %vm786, %v793
          %803 = vst.msk [vmem:[#allocation3 + $0x10] sm:$0xff] %vm786, %v796
          %804 = vst.msk [vmem:[#allocation3 + $0x18] sm:$0xff] %vm786, %v799
        $region108: #{tpu_custom_call.1} parent=71 // pred_fallthru
          _
        %v805 = vld [vmem:[%s518] sm:$0xff]
        %v806 = vld [vmem:[#allocation9] sm:$0xff]
        %v807 = vld [vmem:[#allocation9 + $0x8] sm:$0xff]
        %v808 = vld [vmem:[#allocation9 + $0x10] sm:$0xff]
        %v809 = vld [vmem:[#allocation9 + $0x18] sm:$0xff]
        %v810 = vld [vmem:[#allocation13] sm:$0x1]
        %v812 = vlaneseq
        %v813 = vshrl.u32 %v812, 7
        %v814 = vsub.s32 0, %v813
        %v815 = vrot.slane %v810, %v814
        %vm817 = vcmask 261120
        %v819 = vsel %vm817, %v805, 0
        %821 = vmatprep.subr.mxu0 0.0
        %822 = vmatpush1.msra.mxu0 %v806
        %823 = vmatprep.subr.mxu0 0.0
        %824 = vmatpush1.msra.mxu0 %v807
        %825 = vmatprep.subr.mxu0 0.0
        %826 = vmatpush1.msra.mxu0 %v808
        %827 = vmatprep.subr.mxu0 0.0
        %828 = vmatpush1.msra.mxu0 %v809
        %829 = vmatprep.subr.mxu0 0.0
        %830 = vmatpush1.msra.mxu0 0.0
        %831 = vmatprep.subr.mxu0 0.0
        %832 = vmatpush1.msra.mxu0 0.0
        %833 = vmatprep.subr.mxu0 0.0
        %834 = vmatpush1.msra.mxu0 0.0
        %835 = vmatprep.subr.mxu0 0.0
        %836 = vmatpush1.msra.mxu0 0.0
        %837 = vmatprep.subr.mxu0 0.0
        %838 = vmatpush1.msra.mxu0 0.0
        %839 = vmatprep.subr.mxu0 0.0
        %840 = vmatpush1.msra.mxu0 0.0
        %841 = vmatprep.subr.mxu0 0.0
        %842 = vmatpush1.msra.mxu0 0.0
        %843 = vmatprep.subr.mxu0 0.0
        %844 = vmatpush1.msra.mxu0 0.0
        %845 = vmatprep.subr.mxu0 0.0
        %846 = vmatpush1.msra.mxu0 0.0
        %847 = vmatprep.subr.mxu0 0.0
        %848 = vmatpush1.msra.mxu0 0.0
        %849 = vmatprep.subr.mxu0 0.0
        %850 = vmatpush1.msra.mxu0 0.0
        %851 = vmatprep.subr.mxu0 0.0
        %852 = vmatpush1.msra.mxu0 0.0
        %853 = vmatprep.subr.mxu0 0.0
        %854 = vmatpush1.msra.mxu0 0.0
        %855 = vmatprep.subr.mxu0 0.0
        %856 = vmatpush1.msra.mxu0 0.0
        %857 = vmatprep.subr.mxu0 0.0
        %858 = vmatpush1.msra.mxu0 0.0
        %859 = vmatprep.subr.mxu0 0.0
        %860 = vmatpush1.msra.mxu0 0.0
        %861 = vmatprep.subr.mxu0 0.0
        %862 = vmatpush1.msra.mxu0 0.0
        %863 = vmatprep.subr.mxu0 0.0
        %864 = vmatpush1.msra.mxu0 0.0
        %865 = vmatprep.subr.mxu0 0.0
        %866 = vmatpush1.msra.mxu0 0.0
        %867 = vmatprep.subr.mxu0 0.0
        %868 = vmatpush1.msra.mxu0 0.0
        %869 = vmatprep.subr.mxu0 0.0
        %870 = vmatpush1.msra.mxu0 0.0
        %871 = vmatprep.subr.mxu0 0.0
        %872 = vmatpush1.msra.mxu0 0.0
        %873 = vmatprep.subr.mxu0 0.0
        %874 = vmatpush1.msra.mxu0 0.0
        %875 = vmatprep.subr.mxu0 0.0
        %876 = vmatpush1.msra.mxu0 0.0
        %877 = vmatprep.subr.mxu0 0.0
        %878 = vmatpush1.msra.mxu0 0.0
        %879 = vmatprep.subr.mxu0 0.0
        %880 = vmatpush1.msra.mxu0 0.0
        %881 = vmatprep.subr.mxu0 0.0
        %882 = vmatpush1.msra.mxu0 0.0
        %883 = vmatprep.subr.mxu0 0.0
        %884 = vmatpush1.msra.mxu0 0.0
        %885 = vmatprep.mubr.f32.mxu0 0.0
        %886 = vmatmul.mubr.f32.gmra.mrb[0].mxu0 %v819
        %v887 = vpop.f32.mrb[0].mxu0
        %v888 = vadd.f32 %v815, %v887
        %v889 = vpop.f32.mrb[0].mxu0
        %890 = vdwg.mxu0
        %v891 = vmul.f32 %v888, 0.35355338
        %893 = vrot.lane.b32.xlu0 %v891, 120
        %v894 = vpop.permute.xlu0 %893
        %895 = vrot.lane.b32.xlu0 %v891, 112
        %v896 = vpop.permute.xlu0 %895
        %897 = vrot.lane.b32.xlu0 %v891, 104
        %v898 = vpop.permute.xlu0 %897
        %v899 = vld [vmem:[%s604] sm:$0x1]
        %vm900 = vcmp.gt.f32.partialorder %v899, 0.5
        %v901 = vsel %vm900, -1e+30, 0.0
        %v902 = vld [vmem:[#allocation2] sm:$0xff]
        %v903 = vld [vmem:[#allocation2 + $0x8] sm:$0xff]
        %v904 = vld [vmem:[#allocation2 + $0x10] sm:$0xff]
        %v905 = vld [vmem:[#allocation2 + $0x18] sm:$0xff]
        %v907 = vlaneseq
        %v908 = vshrl.u32 %v907, 7
        %v909 = vsub.s32 0, %v908
        %v910 = vrot.slane %v901, %v909
        %vm912 = vcmask 64512
        %v913 = vsel %vm912, %v891, 0
        %v916 = vsel %vm912, %v902, 0
        %918 = vmatprep.subr.mxu0 0.0
        %919 = vmatpush1.xpose.msra.mxu0 %v916
        %920 = vmatprep.subr.mxu0 0.0
        %921 = vmatpush1.xpose.msra.mxu0 0.0
        %922 = vmatprep.subr.mxu0 0.0
        %923 = vmatpush1.xpose.msra.mxu0 0.0
        %924 = vmatprep.subr.mxu0 0.0
        %925 = vmatpush1.xpose.msra.mxu0 0.0
        %926 = vmatprep.subr.mxu0 0.0
        %927 = vmatpush1.xpose.msra.mxu0 0.0
        %928 = vmatprep.subr.mxu0 0.0
        %929 = vmatpush1.xpose.msra.mxu0 0.0
        %930 = vmatprep.subr.mxu0 0.0
        %931 = vmatpush1.xpose.msra.mxu0 0.0
        %932 = vmatprep.subr.mxu0 0.0
        %933 = vmatpush1.xpose.msra.mxu0 0.0
        %934 = vmatprep.subr.mxu0 0.0
        %935 = vmatpush1.xpose.msra.mxu0 0.0
        %936 = vmatprep.subr.mxu0 0.0
        %937 = vmatpush1.xpose.msra.mxu0 0.0
        %938 = vmatprep.subr.mxu0 0.0
        %939 = vmatpush1.xpose.msra.mxu0 0.0
        %940 = vmatprep.subr.mxu0 0.0
        %941 = vmatpush1.xpose.msra.mxu0 0.0
        %942 = vmatprep.subr.mxu0 0.0
        %943 = vmatpush1.xpose.msra.mxu0 0.0
        %944 = vmatprep.subr.mxu0 0.0
        %945 = vmatpush1.xpose.msra.mxu0 0.0
        %946 = vmatprep.subr.mxu0 0.0
        %947 = vmatpush1.xpose.msra.mxu0 0.0
        %948 = vmatprep.subr.mxu0 0.0
        %949 = vmatpush1.xpose.msra.mxu0 0.0
        %950 = vmatprep.subr.mxu0 0.0
        %951 = vmatpush1.xpose.msra.mxu0 0.0
        %952 = vmatprep.subr.mxu0 0.0
        %953 = vmatpush1.xpose.msra.mxu0 0.0
        %954 = vmatprep.subr.mxu0 0.0
        %955 = vmatpush1.xpose.msra.mxu0 0.0
        %956 = vmatprep.subr.mxu0 0.0
        %957 = vmatpush1.xpose.msra.mxu0 0.0
        %958 = vmatprep.subr.mxu0 0.0
        %959 = vmatpush1.xpose.msra.mxu0 0.0
        %960 = vmatprep.subr.mxu0 0.0
        %961 = vmatpush1.xpose.msra.mxu0 0.0
        %962 = vmatprep.subr.mxu0 0.0
        %963 = vmatpush1.xpose.msra.mxu0 0.0
        %964 = vmatprep.subr.mxu0 0.0
        %965 = vmatpush1.xpose.msra.mxu0 0.0
        %966 = vmatprep.subr.mxu0 0.0
        %967 = vmatpush1.xpose.msra.mxu0 0.0
        %968 = vmatprep.subr.mxu0 0.0
        %969 = vmatpush1.xpose.msra.mxu0 0.0
        %970 = vmatprep.subr.mxu0 0.0
        %971 = vmatpush1.xpose.msra.mxu0 0.0
        %972 = vmatprep.subr.mxu0 0.0
        %973 = vmatpush1.xpose.msra.mxu0 0.0
        %974 = vmatprep.subr.mxu0 0.0
        %975 = vmatpush1.xpose.msra.mxu0 0.0
        %976 = vmatprep.subr.mxu0 0.0
        %977 = vmatpush1.xpose.msra.mxu0 0.0
        %978 = vmatprep.subr.mxu0 0.0
        %979 = vmatpush1.xpose.msra.mxu0 0.0
        %980 = vmatprep.subr.mxu0 0.0
        %981 = vmatpush1.xpose.msra.mxu0 0.0
        %982 = vmatprep.mubr.f32.mxu0 0.0
        %983 = vmatmul.mubr.f32.gmra.mrb[0].mxu0 %v913
        %v984 = vpop.f32.mrb[0].mxu0
        %v985 = vadd.f32 %v910, %v984
        %v986 = vpop.f32.mrb[0].mxu0
        %987 = vdwg.mxu0
        %v988 = vsel %vm912, %v894, 0
        %v991 = vsel %vm912, %v903, 0
        %993 = vmatprep.subr.mxu0 0.0
        %994 = vmatpush1.xpose.msra.mxu0 %v991
        %995 = vmatprep.subr.mxu0 0.0
        %996 = vmatpush1.xpose.msra.mxu0 0.0
        %997 = vmatprep.subr.mxu0 0.0
        %998 = vmatpush1.xpose.msra.mxu0 0.0
        %999 = vmatprep.subr.mxu0 0.0
        %1000 = vmatpush1.xpose.msra.mxu0 0.0
        %1001 = vmatprep.subr.mxu0 0.0
        %1002 = vmatpush1.xpose.msra.mxu0 0.0
        %1003 = vmatprep.subr.mxu0 0.0
        %1004 = vmatpush1.xpose.msra.mxu0 0.0
        %1005 = vmatprep.subr.mxu0 0.0
        %1006 = vmatpush1.xpose.msra.mxu0 0.0
        %1007 = vmatprep.subr.mxu0 0.0
        %1008 = vmatpush1.xpose.msra.mxu0 0.0
        %1009 = vmatprep.subr.mxu0 0.0
        %1010 = vmatpush1.xpose.msra.mxu0 0.0
        %1011 = vmatprep.subr.mxu0 0.0
        %1012 = vmatpush1.xpose.msra.mxu0 0.0
        %1013 = vmatprep.subr.mxu0 0.0
        %1014 = vmatpush1.xpose.msra.mxu0 0.0
        %1015 = vmatprep.subr.mxu0 0.0
        %1016 = vmatpush1.xpose.msra.mxu0 0.0
        %1017 = vmatprep.subr.mxu0 0.0
        %1018 = vmatpush1.xpose.msra.mxu0 0.0
        %1019 = vmatprep.subr.mxu0 0.0
        %1020 = vmatpush1.xpose.msra.mxu0 0.0
        %1021 = vmatprep.subr.mxu0 0.0
        %1022 = vmatpush1.xpose.msra.mxu0 0.0
        %1023 = vmatprep.subr.mxu0 0.0
        %1024 = vmatpush1.xpose.msra.mxu0 0.0
        %1025 = vmatprep.subr.mxu0 0.0
        %1026 = vmatpush1.xpose.msra.mxu0 0.0
        %1027 = vmatprep.subr.mxu0 0.0
        %1028 = vmatpush1.xpose.msra.mxu0 0.0
        %1029 = vmatprep.subr.mxu0 0.0
        %1030 = vmatpush1.xpose.msra.mxu0 0.0
        %1031 = vmatprep.subr.mxu0 0.0
        %1032 = vmatpush1.xpose.msra.mxu0 0.0
        %1033 = vmatprep.subr.mxu0 0.0
        %1034 = vmatpush1.xpose.msra.mxu0 0.0
        %1035 = vmatprep.subr.mxu0 0.0
        %1036 = vmatpush1.xpose.msra.mxu0 0.0
        %1037 = vmatprep.subr.mxu0 0.0
        %1038 = vmatpush1.xpose.msra.mxu0 0.0
        %1039 = vmatprep.subr.mxu0 0.0
        %1040 = vmatpush1.xpose.msra.mxu0 0.0
        %1041 = vmatprep.subr.mxu0 0.0
        %1042 = vmatpush1.xpose.msra.mxu0 0.0
        %1043 = vmatprep.subr.mxu0 0.0
        %1044 = vmatpush1.xpose.msra.mxu0 0.0
        %1045 = vmatprep.subr.mxu0 0.0
        %1046 = vmatpush1.xpose.msra.mxu0 0.0
        %1047 = vmatprep.subr.mxu0 0.0
        %1048 = vmatpush1.xpose.msra.mxu0 0.0
        %1049 = vmatprep.subr.mxu0 0.0
        %1050 = vmatpush1.xpose.msra.mxu0 0.0
        %1051 = vmatprep.subr.mxu0 0.0
        %1052 = vmatpush1.xpose.msra.mxu0 0.0
        %1053 = vmatprep.subr.mxu0 0.0
        %1054 = vmatpush1.xpose.msra.mxu0 0.0
        %1055 = vmatprep.subr.mxu0 0.0
        %1056 = vmatpush1.xpose.msra.mxu0 0.0
        %1057 = vmatprep.mubr.f32.mxu0 0.0
        %1058 = vmatmul.mubr.f32.gmra.mrb[0].mxu0 %v988
        %v1059 = vpop.f32.mrb[0].mxu0
        %v1060 = vadd.f32 %v910, %v1059
        %v1061 = vpop.f32.mrb[0].mxu0
        %1062 = vdwg.mxu0
        %v1063 = vsel %vm912, %v896, 0
        %v1066 = vsel %vm912, %v904, 0
        %1068 = vmatprep.subr.mxu0 0.0
        %1069 = vmatpush1.xpose.msra.mxu0 %v1066
        %1070 = vmatprep.subr.mxu0 0.0
        %1071 = vmatpush1.xpose.msra.mxu0 0.0
        %1072 = vmatprep.subr.mxu0 0.0
        %1073 = vmatpush1.xpose.msra.mxu0 0.0
        %1074 = vmatprep.subr.mxu0 0.0
        %1075 = vmatpush1.xpose.msra.mxu0 0.0
        %1076 = vmatprep.subr.mxu0 0.0
        %1077 = vmatpush1.xpose.msra.mxu0 0.0
        %1078 = vmatprep.subr.mxu0 0.0
        %1079 = vmatpush1.xpose.msra.mxu0 0.0
        %1080 = vmatprep.subr.mxu0 0.0
        %1081 = vmatpush1.xpose.msra.mxu0 0.0
        %1082 = vmatprep.subr.mxu0 0.0
        %1083 = vmatpush1.xpose.msra.mxu0 0.0
        %1084 = vmatprep.subr.mxu0 0.0
        %1085 = vmatpush1.xpose.msra.mxu0 0.0
        %1086 = vmatprep.subr.mxu0 0.0
        %1087 = vmatpush1.xpose.msra.mxu0 0.0
        %1088 = vmatprep.subr.mxu0 0.0
        %1089 = vmatpush1.xpose.msra.mxu0 0.0
        %1090 = vmatprep.subr.mxu0 0.0
        %1091 = vmatpush1.xpose.msra.mxu0 0.0
        %1092 = vmatprep.subr.mxu0 0.0
        %1093 = vmatpush1.xpose.msra.mxu0 0.0
        %1094 = vmatprep.subr.mxu0 0.0
        %1095 = vmatpush1.xpose.msra.mxu0 0.0
        %1096 = vmatprep.subr.mxu0 0.0
        %1097 = vmatpush1.xpose.msra.mxu0 0.0
        %1098 = vmatprep.subr.mxu0 0.0
        %1099 = vmatpush1.xpose.msra.mxu0 0.0
        %1100 = vmatprep.subr.mxu0 0.0
        %1101 = vmatpush1.xpose.msra.mxu0 0.0
        %1102 = vmatprep.subr.mxu0 0.0
        %1103 = vmatpush1.xpose.msra.mxu0 0.0
        %1104 = vmatprep.subr.mxu0 0.0
        %1105 = vmatpush1.xpose.msra.mxu0 0.0
        %1106 = vmatprep.subr.mxu0 0.0
        %1107 = vmatpush1.xpose.msra.mxu0 0.0
        %1108 = vmatprep.subr.mxu0 0.0
        %1109 = vmatpush1.xpose.msra.mxu0 0.0
        %1110 = vmatprep.subr.mxu0 0.0
        %1111 = vmatpush1.xpose.msra.mxu0 0.0
        %1112 = vmatprep.subr.mxu0 0.0
        %1113 = vmatpush1.xpose.msra.mxu0 0.0
        %1114 = vmatprep.subr.mxu0 0.0
        %1115 = vmatpush1.xpose.msra.mxu0 0.0
        %1116 = vmatprep.subr.mxu0 0.0
        %1117 = vmatpush1.xpose.msra.mxu0 0.0
        %1118 = vmatprep.subr.mxu0 0.0
        %1119 = vmatpush1.xpose.msra.mxu0 0.0
        %1120 = vmatprep.subr.mxu0 0.0
        %1121 = vmatpush1.xpose.msra.mxu0 0.0
        %1122 = vmatprep.subr.mxu0 0.0
        %1123 = vmatpush1.xpose.msra.mxu0 0.0
        %1124 = vmatprep.subr.mxu0 0.0
        %1125 = vmatpush1.xpose.msra.mxu0 0.0
        %1126 = vmatprep.subr.mxu0 0.0
        %1127 = vmatpush1.xpose.msra.mxu0 0.0
        %1128 = vmatprep.subr.mxu0 0.0
        %1129 = vmatpush1.xpose.msra.mxu0 0.0
        %1130 = vmatprep.subr.mxu0 0.0
        %1131 = vmatpush1.xpose.msra.mxu0 0.0
        %1132 = vmatprep.mubr.f32.mxu0 0.0
        %1133 = vmatmul.mubr.f32.gmra.mrb[0].mxu0 %v1063
        %v1134 = vpop.f32.mrb[0].mxu0
        %v1135 = vadd.f32 %v910, %v1134
        %v1136 = vpop.f32.mrb[0].mxu0
        %1137 = vdwg.mxu0
        %v1138 = vsel %vm912, %v898, 0
        %v1141 = vsel %vm912, %v905, 0
        %1143 = vmatprep.subr.mxu0 0.0
        %1144 = vmatpush1.xpose.msra.mxu0 %v1141
        %1145 = vmatprep.subr.mxu0 0.0
        %1146 = vmatpush1.xpose.msra.mxu0 0.0
        %1147 = vmatprep.subr.mxu0 0.0
        %1148 = vmatpush1.xpose.msra.mxu0 0.0
        %1149 = vmatprep.subr.mxu0 0.0
        %1150 = vmatpush1.xpose.msra.mxu0 0.0
        %1151 = vmatprep.subr.mxu0 0.0
        %1152 = vmatpush1.xpose.msra.mxu0 0.0
        %1153 = vmatprep.subr.mxu0 0.0
        %1154 = vmatpush1.xpose.msra.mxu0 0.0
        %1155 = vmatprep.subr.mxu0 0.0
        %1156 = vmatpush1.xpose.msra.mxu0 0.0
        %1157 = vmatprep.subr.mxu0 0.0
        %1158 = vmatpush1.xpose.msra.mxu0 0.0
        %1159 = vmatprep.subr.mxu0 0.0
        %1160 = vmatpush1.xpose.msra.mxu0 0.0
        %1161 = vmatprep.subr.mxu0 0.0
        %1162 = vmatpush1.xpose.msra.mxu0 0.0
        %1163 = vmatprep.subr.mxu0 0.0
        %1164 = vmatpush1.xpose.msra.mxu0 0.0
        %1165 = vmatprep.subr.mxu0 0.0
        %1166 = vmatpush1.xpose.msra.mxu0 0.0
        %1167 = vmatprep.subr.mxu0 0.0
        %1168 = vmatpush1.xpose.msra.mxu0 0.0
        %1169 = vmatprep.subr.mxu0 0.0
        %1170 = vmatpush1.xpose.msra.mxu0 0.0
        %1171 = vmatprep.subr.mxu0 0.0
        %1172 = vmatpush1.xpose.msra.mxu0 0.0
        %1173 = vmatprep.subr.mxu0 0.0
        %1174 = vmatpush1.xpose.msra.mxu0 0.0
        %1175 = vmatprep.subr.mxu0 0.0
        %1176 = vmatpush1.xpose.msra.mxu0 0.0
        %1177 = vmatprep.subr.mxu0 0.0
        %1178 = vmatpush1.xpose.msra.mxu0 0.0
        %1179 = vmatprep.subr.mxu0 0.0
        %1180 = vmatpush1.xpose.msra.mxu0 0.0
        %1181 = vmatprep.subr.mxu0 0.0
        %1182 = vmatpush1.xpose.msra.mxu0 0.0
        %1183 = vmatprep.subr.mxu0 0.0
        %1184 = vmatpush1.xpose.msra.mxu0 0.0
        %1185 = vmatprep.subr.mxu0 0.0
        %1186 = vmatpush1.xpose.msra.mxu0 0.0
        %1187 = vmatprep.subr.mxu0 0.0
        %1188 = vmatpush1.xpose.msra.mxu0 0.0
        %1189 = vmatprep.subr.mxu0 0.0
        %1190 = vmatpush1.xpose.msra.mxu0 0.0
        %1191 = vmatprep.subr.mxu0 0.0
        %1192 = vmatpush1.xpose.msra.mxu0 0.0
        %1193 = vmatprep.subr.mxu0 0.0
        %1194 = vmatpush1.xpose.msra.mxu0 0.0
        %1195 = vmatprep.subr.mxu0 0.0
        %1196 = vmatpush1.xpose.msra.mxu0 0.0
        %1197 = vmatprep.subr.mxu0 0.0
        %1198 = vmatpush1.xpose.msra.mxu0 0.0
        %1199 = vmatprep.subr.mxu0 0.0
        %1200 = vmatpush1.xpose.msra.mxu0 0.0
        %1201 = vmatprep.subr.mxu0 0.0
        %1202 = vmatpush1.xpose.msra.mxu0 0.0
        %1203 = vmatprep.subr.mxu0 0.0
        %1204 = vmatpush1.xpose.msra.mxu0 0.0
        %1205 = vmatprep.subr.mxu0 0.0
        %1206 = vmatpush1.xpose.msra.mxu0 0.0
        %1207 = vmatprep.mubr.f32.mxu0 0.0
        %1208 = vmatmul.mubr.f32.gmra.mrb[0].mxu0 %v1138
        %v1209 = vpop.f32.mrb[0].mxu0
        %v1210 = vadd.f32 %v910, %v1209
        %v1211 = vpop.f32.mrb[0].mxu0
        %1212 = vdwg.mxu0
        %v1213 = vsel %vm912, %v985, -inf
        %1214 = vmax.xlane.f32.xlu0 %v1213
        %v1215 = vpop.xlane.xlu0 %1214
        %v1216 = vsel %vm912, %v1060, -inf
        %1217 = vmax.xlane.f32.xlu0 %v1216
        %v1218 = vpop.xlane.xlu0 %1217
        %v1219 = vsel %vm912, %v1135, -inf
        %1220 = vmax.xlane.f32.xlu0 %v1219
        %v1221 = vpop.xlane.xlu0 %1220
        %v1222 = vsel %vm912, %v1210, -inf
        %1223 = vmax.xlane.f32.xlu0 %v1222
        %v1224 = vpop.xlane.xlu0 %1223
        %v1225 = vsub.f32 %v985, %v1215
        %v1226 = vsub.f32 %v1060, %v1218
        %v1227 = vsub.f32 %v1135, %v1221
        %v1228 = vsub.f32 %v1210, %v1224
        %v1229 = vmul.f32 %v1225, 1.442695
        %v1230 = vpow.pop %v1229
        %v1231 = vmul.f32 %v1226, 1.442695
        %v1232 = vpow.pop %v1231
        %v1233 = vmul.f32 %v1227, 1.442695
        %v1234 = vpow.pop %v1233
        %v1235 = vmul.f32 %v1228, 1.442695
        %v1236 = vpow.pop %v1235
        %v1237 = vsel %vm912, %v1230, 0.0
        %1238 = vadd.xlane.f32.xlu0 %v1237
        %v1239 = vpop.xlane.xlu0 %1238
        %v1240 = vsel %vm912, %v1232, 0.0
        %1241 = vadd.xlane.f32.xlu0 %v1240
        %v1242 = vpop.xlane.xlu0 %1241
        %v1243 = vsel %vm912, %v1234, 0.0
        %1244 = vadd.xlane.f32.xlu0 %v1243
        %v1245 = vpop.xlane.xlu0 %1244
        %v1246 = vsel %vm912, %v1236, 0.0
        %1247 = vadd.xlane.f32.xlu0 %v1246
        %v1248 = vpop.xlane.xlu0 %1247
        %v1249 = vrcp.pop %v1239
        %v1250 = vrcp.pop %v1242
        %v1251 = vrcp.pop %v1245
        %v1252 = vrcp.pop %v1248
        %v1253 = vmul.f32 %v1230, %v1249
        %v1254 = vmul.f32 %v1232, %v1250
        %v1255 = vmul.f32 %v1234, %v1251
        %v1256 = vmul.f32 %v1236, %v1252
        %v1257 = vld [vmem:[#allocation3] sm:$0xff]
        %v1258 = vld [vmem:[#allocation3 + $0x8] sm:$0xff]
        %v1259 = vld [vmem:[#allocation3 + $0x10] sm:$0xff]
        %v1260 = vld [vmem:[#allocation3 + $0x18] sm:$0xff]
        %v1262 = vsel %vm912, %v1253, 0
        %1264 = vmatprep.subr.mxu0 0.0
        %1265 = vmatpush1.msra.mxu0 %v1257
        %1266 = vmatprep.subr.mxu0 0.0
        %1267 = vmatpush1.msra.mxu0 0.0
        %1268 = vmatprep.subr.mxu0 0.0
        %1269 = vmatpush1.msra.mxu0 0.0
        %1270 = vmatprep.subr.mxu0 0.0
        %1271 = vmatpush1.msra.mxu0 0.0
        %1272 = vmatprep.subr.mxu0 0.0
        %1273 = vmatpush1.msra.mxu0 0.0
        %1274 = vmatprep.subr.mxu0 0.0
        %1275 = vmatpush1.msra.mxu0 0.0
        %1276 = vmatprep.subr.mxu0 0.0
        %1277 = vmatpush1.msra.mxu0 0.0
        %1278 = vmatprep.subr.mxu0 0.0
        %1279 = vmatpush1.msra.mxu0 0.0
        %1280 = vmatprep.subr.mxu0 0.0
        %1281 = vmatpush1.msra.mxu0 0.0
        %1282 = vmatprep.subr.mxu0 0.0
        %1283 = vmatpush1.msra.mxu0 0.0
        %1284 = vmatprep.subr.mxu0 0.0
        %1285 = vmatpush1.msra.mxu0 0.0
        %1286 = vmatprep.subr.mxu0 0.0
        %1287 = vmatpush1.msra.mxu0 0.0
        %1288 = vmatprep.subr.mxu0 0.0
        %1289 = vmatpush1.msra.mxu0 0.0
        %1290 = vmatprep.subr.mxu0 0.0
        %1291 = vmatpush1.msra.mxu0 0.0
        %1292 = vmatprep.subr.mxu0 0.0
        %1293 = vmatpush1.msra.mxu0 0.0
        %1294 = vmatprep.subr.mxu0 0.0
        %1295 = vmatpush1.msra.mxu0 0.0
        %1296 = vmatprep.subr.mxu0 0.0
        %1297 = vmatpush1.msra.mxu0 0.0
        %1298 = vmatprep.subr.mxu0 0.0
        %1299 = vmatpush1.msra.mxu0 0.0
        %1300 = vmatprep.subr.mxu0 0.0
        %1301 = vmatpush1.msra.mxu0 0.0
        %1302 = vmatprep.subr.mxu0 0.0
        %1303 = vmatpush1.msra.mxu0 0.0
        %1304 = vmatprep.subr.mxu0 0.0
        %1305 = vmatpush1.msra.mxu0 0.0
        %1306 = vmatprep.subr.mxu0 0.0
        %1307 = vmatpush1.msra.mxu0 0.0
        %1308 = vmatprep.subr.mxu0 0.0
        %1309 = vmatpush1.msra.mxu0 0.0
        %1310 = vmatprep.subr.mxu0 0.0
        %1311 = vmatpush1.msra.mxu0 0.0
        %1312 = vmatprep.subr.mxu0 0.0
        %1313 = vmatpush1.msra.mxu0 0.0
        %1314 = vmatprep.subr.mxu0 0.0
        %1315 = vmatpush1.msra.mxu0 0.0
        %1316 = vmatprep.subr.mxu0 0.0
        %1317 = vmatpush1.msra.mxu0 0.0
        %1318 = vmatprep.subr.mxu0 0.0
        %1319 = vmatpush1.msra.mxu0 0.0
        %1320 = vmatprep.subr.mxu0 0.0
        %1321 = vmatpush1.msra.mxu0 0.0
        %1322 = vmatprep.subr.mxu0 0.0
        %1323 = vmatpush1.msra.mxu0 0.0
        %1324 = vmatprep.subr.mxu0 0.0
        %1325 = vmatpush1.msra.mxu0 0.0
        %1326 = vmatprep.subr.mxu0 0.0
        %1327 = vmatpush1.msra.mxu0 0.0
        %1328 = vmatprep.mubr.f32.mxu0 0.0
        %1329 = vmatmul.mubr.f32.gmra.mrb[0].mxu0 %v1262
        %v1330 = vpop.f32.mrb[0].mxu0
        %v1331 = vadd.f32 0.0, %v1330
        %v1332 = vpop.f32.mrb[0].mxu0
        %1333 = vdwg.mxu0
        %v1335 = vsel %vm912, %v1254, 0
        %1337 = vmatprep.subr.mxu0 0.0
        %1338 = vmatpush1.msra.mxu0 %v1258
        %1339 = vmatprep.subr.mxu0 0.0
        %1340 = vmatpush1.msra.mxu0 0.0
        %1341 = vmatprep.subr.mxu0 0.0
        %1342 = vmatpush1.msra.mxu0 0.0
        %1343 = vmatprep.subr.mxu0 0.0
        %1344 = vmatpush1.msra.mxu0 0.0
        %1345 = vmatprep.subr.mxu0 0.0
        %1346 = vmatpush1.msra.mxu0 0.0
        %1347 = vmatprep.subr.mxu0 0.0
        %1348 = vmatpush1.msra.mxu0 0.0
        %1349 = vmatprep.subr.mxu0 0.0
        %1350 = vmatpush1.msra.mxu0 0.0
        %1351 = vmatprep.subr.mxu0 0.0
        %1352 = vmatpush1.msra.mxu0 0.0
        %1353 = vmatprep.subr.mxu0 0.0
        %1354 = vmatpush1.msra.mxu0 0.0
        %1355 = vmatprep.subr.mxu0 0.0
        %1356 = vmatpush1.msra.mxu0 0.0
        %1357 = vmatprep.subr.mxu0 0.0
        %1358 = vmatpush1.msra.mxu0 0.0
        %1359 = vmatprep.subr.mxu0 0.0
        %1360 = vmatpush1.msra.mxu0 0.0
        %1361 = vmatprep.subr.mxu0 0.0
        %1362 = vmatpush1.msra.mxu0 0.0
        %1363 = vmatprep.subr.mxu0 0.0
        %1364 = vmatpush1.msra.mxu0 0.0
        %1365 = vmatprep.subr.mxu0 0.0
        %1366 = vmatpush1.msra.mxu0 0.0
        %1367 = vmatprep.subr.mxu0 0.0
        %1368 = vmatpush1.msra.mxu0 0.0
        %1369 = vmatprep.subr.mxu0 0.0
        %1370 = vmatpush1.msra.mxu0 0.0
        %1371 = vmatprep.subr.mxu0 0.0
        %1372 = vmatpush1.msra.mxu0 0.0
        %1373 = vmatprep.subr.mxu0 0.0
        %1374 = vmatpush1.msra.mxu0 0.0
        %1375 = vmatprep.subr.mxu0 0.0
        %1376 = vmatpush1.msra.mxu0 0.0
        %1377 = vmatprep.subr.mxu0 0.0
        %1378 = vmatpush1.msra.mxu0 0.0
        %1379 = vmatprep.subr.mxu0 0.0
        %1380 = vmatpush1.msra.mxu0 0.0
        %1381 = vmatprep.subr.mxu0 0.0
        %1382 = vmatpush1.msra.mxu0 0.0
        %1383 = vmatprep.subr.mxu0 0.0
        %1384 = vmatpush1.msra.mxu0 0.0
        %1385 = vmatprep.subr.mxu0 0.0
        %1386 = vmatpush1.msra.mxu0 0.0
        %1387 = vmatprep.subr.mxu0 0.0
        %1388 = vmatpush1.msra.mxu0 0.0
        %1389 = vmatprep.subr.mxu0 0.0
        %1390 = vmatpush1.msra.mxu0 0.0
        %1391 = vmatprep.subr.mxu0 0.0
        %1392 = vmatpush1.msra.mxu0 0.0
        %1393 = vmatprep.subr.mxu0 0.0
        %1394 = vmatpush1.msra.mxu0 0.0
        %1395 = vmatprep.subr.mxu0 0.0
        %1396 = vmatpush1.msra.mxu0 0.0
        %1397 = vmatprep.subr.mxu0 0.0
        %1398 = vmatpush1.msra.mxu0 0.0
        %1399 = vmatprep.subr.mxu0 0.0
        %1400 = vmatpush1.msra.mxu0 0.0
        %1401 = vmatprep.mubr.f32.mxu0 0.0
        %1402 = vmatmul.mubr.f32.gmra.mrb[0].mxu0 %v1335
        %v1403 = vpop.f32.mrb[0].mxu0
        %v1404 = vadd.f32 0.0, %v1403
        %v1405 = vpop.f32.mrb[0].mxu0
        %1406 = vdwg.mxu0
        %v1408 = vsel %vm912, %v1255, 0
        %1410 = vmatprep.subr.mxu0 0.0
        %1411 = vmatpush1.msra.mxu0 %v1259
        %1412 = vmatprep.subr.mxu0 0.0
        %1413 = vmatpush1.msra.mxu0 0.0
        %1414 = vmatprep.subr.mxu0 0.0
        %1415 = vmatpush1.msra.mxu0 0.0
        %1416 = vmatprep.subr.mxu0 0.0
        %1417 = vmatpush1.msra.mxu0 0.0
        %1418 = vmatprep.subr.mxu0 0.0
        %1419 = vmatpush1.msra.mxu0 0.0
        %1420 = vmatprep.subr.mxu0 0.0
        %1421 = vmatpush1.msra.mxu0 0.0
        %1422 = vmatprep.subr.mxu0 0.0
        %1423 = vmatpush1.msra.mxu0 0.0
        %1424 = vmatprep.subr.mxu0 0.0
        %1425 = vmatpush1.msra.mxu0 0.0
        %1426 = vmatprep.subr.mxu0 0.0
        %1427 = vmatpush1.msra.mxu0 0.0
        %1428 = vmatprep.subr.mxu0 0.0
        %1429 = vmatpush1.msra.mxu0 0.0
        %1430 = vmatprep.subr.mxu0 0.0
        %1431 = vmatpush1.msra.mxu0 0.0
        %1432 = vmatprep.subr.mxu0 0.0
        %1433 = vmatpush1.msra.mxu0 0.0
        %1434 = vmatprep.subr.mxu0 0.0
        %1435 = vmatpush1.msra.mxu0 0.0
        %1436 = vmatprep.subr.mxu0 0.0
        %1437 = vmatpush1.msra.mxu0 0.0
        %1438 = vmatprep.subr.mxu0 0.0
        %1439 = vmatpush1.msra.mxu0 0.0
        %1440 = vmatprep.subr.mxu0 0.0
        %1441 = vmatpush1.msra.mxu0 0.0
        %1442 = vmatprep.subr.mxu0 0.0
        %1443 = vmatpush1.msra.mxu0 0.0
        %1444 = vmatprep.subr.mxu0 0.0
        %1445 = vmatpush1.msra.mxu0 0.0
        %1446 = vmatprep.subr.mxu0 0.0
        %1447 = vmatpush1.msra.mxu0 0.0
        %1448 = vmatprep.subr.mxu0 0.0
        %1449 = vmatpush1.msra.mxu0 0.0
        %1450 = vmatprep.subr.mxu0 0.0
        %1451 = vmatpush1.msra.mxu0 0.0
        %1452 = vmatprep.subr.mxu0 0.0
        %1453 = vmatpush1.msra.mxu0 0.0
        %1454 = vmatprep.subr.mxu0 0.0
        %1455 = vmatpush1.msra.mxu0 0.0
        %1456 = vmatprep.subr.mxu0 0.0
        %1457 = vmatpush1.msra.mxu0 0.0
        %1458 = vmatprep.subr.mxu0 0.0
        %1459 = vmatpush1.msra.mxu0 0.0
        %1460 = vmatprep.subr.mxu0 0.0
        %1461 = vmatpush1.msra.mxu0 0.0
        %1462 = vmatprep.subr.mxu0 0.0
        %1463 = vmatpush1.msra.mxu0 0.0
        %1464 = vmatprep.subr.mxu0 0.0
        %1465 = vmatpush1.msra.mxu0 0.0
        %1466 = vmatprep.subr.mxu0 0.0
        %1467 = vmatpush1.msra.mxu0 0.0
        %1468 = vmatprep.subr.mxu0 0.0
        %1469 = vmatpush1.msra.mxu0 0.0
        %1470 = vmatprep.subr.mxu0 0.0
        %1471 = vmatpush1.msra.mxu0 0.0
        %1472 = vmatprep.subr.mxu0 0.0
        %1473 = vmatpush1.msra.mxu0 0.0
        %1474 = vmatprep.mubr.f32.mxu0 0.0
        %1475 = vmatmul.mubr.f32.gmra.mrb[0].mxu0 %v1408
        %v1476 = vpop.f32.mrb[0].mxu0
        %v1477 = vadd.f32 0.0, %v1476
        %v1478 = vpop.f32.mrb[0].mxu0
        %1479 = vdwg.mxu0
        %v1481 = vsel %vm912, %v1256, 0
        %1483 = vmatprep.subr.mxu0 0.0
        %1484 = vmatpush1.msra.mxu0 %v1260
        %1485 = vmatprep.subr.mxu0 0.0
        %1486 = vmatpush1.msra.mxu0 0.0
        %1487 = vmatprep.subr.mxu0 0.0
        %1488 = vmatpush1.msra.mxu0 0.0
        %1489 = vmatprep.subr.mxu0 0.0
        %1490 = vmatpush1.msra.mxu0 0.0
        %1491 = vmatprep.subr.mxu0 0.0
        %1492 = vmatpush1.msra.mxu0 0.0
        %1493 = vmatprep.subr.mxu0 0.0
        %1494 = vmatpush1.msra.mxu0 0.0
        %1495 = vmatprep.subr.mxu0 0.0
        %1496 = vmatpush1.msra.mxu0 0.0
        %1497 = vmatprep.subr.mxu0 0.0
        %1498 = vmatpush1.msra.mxu0 0.0
        %1499 = vmatprep.subr.mxu0 0.0
        %1500 = vmatpush1.msra.mxu0 0.0
        %1501 = vmatprep.subr.mxu0 0.0
        %1502 = vmatpush1.msra.mxu0 0.0
        %1503 = vmatprep.subr.mxu0 0.0
        %1504 = vmatpush1.msra.mxu0 0.0
        %1505 = vmatprep.subr.mxu0 0.0
        %1506 = vmatpush1.msra.mxu0 0.0
        %1507 = vmatprep.subr.mxu0 0.0
        %1508 = vmatpush1.msra.mxu0 0.0
        %1509 = vmatprep.subr.mxu0 0.0
        %1510 = vmatpush1.msra.mxu0 0.0
        %1511 = vmatprep.subr.mxu0 0.0
        %1512 = vmatpush1.msra.mxu0 0.0
        %1513 = vmatprep.subr.mxu0 0.0
        %1514 = vmatpush1.msra.mxu0 0.0
        %1515 = vmatprep.subr.mxu0 0.0
        %1516 = vmatpush1.msra.mxu0 0.0
        %1517 = vmatprep.subr.mxu0 0.0
        %1518 = vmatpush1.msra.mxu0 0.0
        %1519 = vmatprep.subr.mxu0 0.0
        %1520 = vmatpush1.msra.mxu0 0.0
        %1521 = vmatprep.subr.mxu0 0.0
        %1522 = vmatpush1.msra.mxu0 0.0
        %1523 = vmatprep.subr.mxu0 0.0
        %1524 = vmatpush1.msra.mxu0 0.0
        %1525 = vmatprep.subr.mxu0 0.0
        %1526 = vmatpush1.msra.mxu0 0.0
        %1527 = vmatprep.subr.mxu0 0.0
        %1528 = vmatpush1.msra.mxu0 0.0
        %1529 = vmatprep.subr.mxu0 0.0
        %1530 = vmatpush1.msra.mxu0 0.0
        %1531 = vmatprep.subr.mxu0 0.0
        %1532 = vmatpush1.msra.mxu0 0.0
        %1533 = vmatprep.subr.mxu0 0.0
        %1534 = vmatpush1.msra.mxu0 0.0
        %1535 = vmatprep.subr.mxu0 0.0
        %1536 = vmatpush1.msra.mxu0 0.0
        %1537 = vmatprep.subr.mxu0 0.0
        %1538 = vmatpush1.msra.mxu0 0.0
        %1539 = vmatprep.subr.mxu0 0.0
        %1540 = vmatpush1.msra.mxu0 0.0
        %1541 = vmatprep.subr.mxu0 0.0
        %1542 = vmatpush1.msra.mxu0 0.0
        %1543 = vmatprep.subr.mxu0 0.0
        %1544 = vmatpush1.msra.mxu0 0.0
        %1545 = vmatprep.subr.mxu0 0.0
        %1546 = vmatpush1.msra.mxu0 0.0
        %1547 = vmatprep.mubr.f32.mxu0 0.0
        %1548 = vmatmul.mubr.f32.gmra.mrb[0].mxu0 %v1481
        %v1549 = vpop.f32.mrb[0].mxu0
        %v1550 = vadd.f32 0.0, %v1549
        %v1551 = vpop.f32.mrb[0].mxu0
        %1552 = vdwg.mxu0
        %v1553 = vld [vmem:[%s9] sm:$0xff]
        %v1554 = vld [vmem:[%s9 + $0x8] sm:$0xff]
        %v1556 = vsel %vm912, %v1404, 0
        %1558 = vmatprep.subr.mxu0 0.0
        %1559 = vmatpush1.msra.mxu0 %v1554
        %1560 = vmatprep.subr.mxu0 0.0
        %1561 = vmatpush1.msra.mxu0 0.0
        %1562 = vmatprep.subr.mxu0 0.0
        %1563 = vmatpush1.msra.mxu0 0.0
        %1564 = vmatprep.subr.mxu0 0.0
        %1565 = vmatpush1.msra.mxu0 0.0
        %1566 = vmatprep.subr.mxu0 0.0
        %1567 = vmatpush1.msra.mxu0 0.0
        %1568 = vmatprep.subr.mxu0 0.0
        %1569 = vmatpush1.msra.mxu0 0.0
        %1570 = vmatprep.subr.mxu0 0.0
        %1571 = vmatpush1.msra.mxu0 0.0
        %1572 = vmatprep.subr.mxu0 0.0
        %1573 = vmatpush1.msra.mxu0 0.0
        %1574 = vmatprep.subr.mxu0 0.0
        %1575 = vmatpush1.msra.mxu0 0.0
        %1576 = vmatprep.subr.mxu0 0.0
        %1577 = vmatpush1.msra.mxu0 0.0
        %1578 = vmatprep.subr.mxu0 0.0
        %1579 = vmatpush1.msra.mxu0 0.0
        %1580 = vmatprep.subr.mxu0 0.0
        %1581 = vmatpush1.msra.mxu0 0.0
        %1582 = vmatprep.subr.mxu0 0.0
        %1583 = vmatpush1.msra.mxu0 0.0
        %1584 = vmatprep.subr.mxu0 0.0
        %1585 = vmatpush1.msra.mxu0 0.0
        %1586 = vmatprep.subr.mxu0 0.0
        %1587 = vmatpush1.msra.mxu0 0.0
        %1588 = vmatprep.subr.mxu0 0.0
        %1589 = vmatpush1.msra.mxu0 0.0
        %1590 = vmatprep.subr.mxu0 0.0
        %1591 = vmatpush1.msra.mxu0 0.0
        %1592 = vmatprep.subr.mxu0 0.0
        %1593 = vmatpush1.msra.mxu0 0.0
        %1594 = vmatprep.subr.mxu0 0.0
        %1595 = vmatpush1.msra.mxu0 0.0
        %1596 = vmatprep.subr.mxu0 0.0
        %1597 = vmatpush1.msra.mxu0 0.0
        %1598 = vmatprep.subr.mxu0 0.0
        %1599 = vmatpush1.msra.mxu0 0.0
        %1600 = vmatprep.subr.mxu0 0.0
        %1601 = vmatpush1.msra.mxu0 0.0
        %1602 = vmatprep.subr.mxu0 0.0
        %1603 = vmatpush1.msra.mxu0 0.0
        %1604 = vmatprep.subr.mxu0 0.0
        %1605 = vmatpush1.msra.mxu0 0.0
        %1606 = vmatprep.subr.mxu0 0.0
        %1607 = vmatpush1.msra.mxu0 0.0
        %1608 = vmatprep.subr.mxu0 0.0
        %1609 = vmatpush1.msra.mxu0 0.0
        %1610 = vmatprep.subr.mxu0 0.0
        %1611 = vmatpush1.msra.mxu0 0.0
        %1612 = vmatprep.subr.mxu0 0.0
        %1613 = vmatpush1.msra.mxu0 0.0
        %1614 = vmatprep.subr.mxu0 0.0
        %1615 = vmatpush1.msra.mxu0 0.0
        %1616 = vmatprep.subr.mxu0 0.0
        %1617 = vmatpush1.msra.mxu0 0.0
        %1618 = vmatprep.subr.mxu0 0.0
        %1619 = vmatpush1.msra.mxu0 0.0
        %1620 = vmatprep.subr.mxu0 0.0
        %1621 = vmatpush1.msra.mxu0 0.0
        %1622 = vmatprep.mubr.f32.mxu0 0.0
        %1623 = vmatmul.mubr.f32.gmra.mrb[0].mxu0 %v1556
        %v1624 = vpop.f32.mrb[0].mxu0
        %v1625 = vadd.f32 0.0, %v1624
        %v1626 = vpop.f32.mrb[0].mxu0
        %1627 = vdwg.mxu0
        %v1629 = vsel %vm912, %v1331, 0
        %1631 = vmatprep.subr.mxu0 0.0
        %1632 = vmatpush1.msra.mxu0 %v1553
        %1633 = vmatprep.subr.mxu0 0.0
        %1634 = vmatpush1.msra.mxu0 0.0
        %1635 = vmatprep.subr.mxu0 0.0
        %1636 = vmatpush1.msra.mxu0 0.0
        %1637 = vmatprep.subr.mxu0 0.0
        %1638 = vmatpush1.msra.mxu0 0.0
        %1639 = vmatprep.subr.mxu0 0.0
        %1640 = vmatpush1.msra.mxu0 0.0
        %1641 = vmatprep.subr.mxu0 0.0
        %1642 = vmatpush1.msra.mxu0 0.0
        %1643 = vmatprep.subr.mxu0 0.0
        %1644 = vmatpush1.msra.mxu0 0.0
        %1645 = vmatprep.subr.mxu0 0.0
        %1646 = vmatpush1.msra.mxu0 0.0
        %1647 = vmatprep.subr.mxu0 0.0
        %1648 = vmatpush1.msra.mxu0 0.0
        %1649 = vmatprep.subr.mxu0 0.0
        %1650 = vmatpush1.msra.mxu0 0.0
        %1651 = vmatprep.subr.mxu0 0.0
        %1652 = vmatpush1.msra.mxu0 0.0
        %1653 = vmatprep.subr.mxu0 0.0
        %1654 = vmatpush1.msra.mxu0 0.0
        %1655 = vmatprep.subr.mxu0 0.0
        %1656 = vmatpush1.msra.mxu0 0.0
        %1657 = vmatprep.subr.mxu0 0.0
        %1658 = vmatpush1.msra.mxu0 0.0
        %1659 = vmatprep.subr.mxu0 0.0
        %1660 = vmatpush1.msra.mxu0 0.0
        %1661 = vmatprep.subr.mxu0 0.0
        %1662 = vmatpush1.msra.mxu0 0.0
        %1663 = vmatprep.subr.mxu0 0.0
        %1664 = vmatpush1.msra.mxu0 0.0
        %1665 = vmatprep.subr.mxu0 0.0
        %1666 = vmatpush1.msra.mxu0 0.0
        %1667 = vmatprep.subr.mxu0 0.0
        %1668 = vmatpush1.msra.mxu0 0.0
        %1669 = vmatprep.subr.mxu0 0.0
        %1670 = vmatpush1.msra.mxu0 0.0
        %1671 = vmatprep.subr.mxu0 0.0
        %1672 = vmatpush1.msra.mxu0 0.0
        %1673 = vmatprep.subr.mxu0 0.0
        %1674 = vmatpush1.msra.mxu0 0.0
        %1675 = vmatprep.subr.mxu0 0.0
        %1676 = vmatpush1.msra.mxu0 0.0
        %1677 = vmatprep.subr.mxu0 0.0
        %1678 = vmatpush1.msra.mxu0 0.0
        %1679 = vmatprep.subr.mxu0 0.0
        %1680 = vmatpush1.msra.mxu0 0.0
        %1681 = vmatprep.subr.mxu0 0.0
        %1682 = vmatpush1.msra.mxu0 0.0
        %1683 = vmatprep.subr.mxu0 0.0
        %1684 = vmatpush1.msra.mxu0 0.0
        %1685 = vmatprep.subr.mxu0 0.0
        %1686 = vmatpush1.msra.mxu0 0.0
        %1687 = vmatprep.subr.mxu0 0.0
        %1688 = vmatpush1.msra.mxu0 0.0
        %1689 = vmatprep.subr.mxu0 0.0
        %1690 = vmatpush1.msra.mxu0 0.0
        %1691 = vmatprep.subr.mxu0 0.0
        %1692 = vmatpush1.msra.mxu0 0.0
        %1693 = vmatprep.subr.mxu0 0.0
        %1694 = vmatpush1.msra.mxu0 0.0
        %1695 = vmatprep.mubr.f32.mxu0 0.0
        %1696 = vmatmul.mubr.f32.gmra.mrb[0].mxu0 %v1629
        %v1697 = vpop.f32.mrb[0].mxu0
        %v1698 = vadd.f32 %v1625, %v1697
        %v1699 = vpop.f32.mrb[0].mxu0
        %1700 = vdwg.mxu0
        %v1701 = vld [vmem:[%s9 + $0x10] sm:$0xff]
        %v1703 = vsel %vm912, %v1477, 0
        %1705 = vmatprep.subr.mxu0 0.0
        %1706 = vmatpush1.msra.mxu0 %v1701
        %1707 = vmatprep.subr.mxu0 0.0
        %1708 = vmatpush1.msra.mxu0 0.0
        %1709 = vmatprep.subr.mxu0 0.0
        %1710 = vmatpush1.msra.mxu0 0.0
        %1711 = vmatprep.subr.mxu0 0.0
        %1712 = vmatpush1.msra.mxu0 0.0
        %1713 = vmatprep.subr.mxu0 0.0
        %1714 = vmatpush1.msra.mxu0 0.0
        %1715 = vmatprep.subr.mxu0 0.0
        %1716 = vmatpush1.msra.mxu0 0.0
        %1717 = vmatprep.subr.mxu0 0.0
        %1718 = vmatpush1.msra.mxu0 0.0
        %1719 = vmatprep.subr.mxu0 0.0
        %1720 = vmatpush1.msra.mxu0 0.0
        %1721 = vmatprep.subr.mxu0 0.0
        %1722 = vmatpush1.msra.mxu0 0.0
        %1723 = vmatprep.subr.mxu0 0.0
        %1724 = vmatpush1.msra.mxu0 0.0
        %1725 = vmatprep.subr.mxu0 0.0
        %1726 = vmatpush1.msra.mxu0 0.0
        %1727 = vmatprep.subr.mxu0 0.0
        %1728 = vmatpush1.msra.mxu0 0.0
        %1729 = vmatprep.subr.mxu0 0.0
        %1730 = vmatpush1.msra.mxu0 0.0
        %1731 = vmatprep.subr.mxu0 0.0
        %1732 = vmatpush1.msra.mxu0 0.0
        %1733 = vmatprep.subr.mxu0 0.0
        %1734 = vmatpush1.msra.mxu0 0.0
        %1735 = vmatprep.subr.mxu0 0.0
        %1736 = vmatpush1.msra.mxu0 0.0
        %1737 = vmatprep.subr.mxu0 0.0
        %1738 = vmatpush1.msra.mxu0 0.0
        %1739 = vmatprep.subr.mxu0 0.0
        %1740 = vmatpush1.msra.mxu0 0.0
        %1741 = vmatprep.subr.mxu0 0.0
        %1742 = vmatpush1.msra.mxu0 0.0
        %1743 = vmatprep.subr.mxu0 0.0
        %1744 = vmatpush1.msra.mxu0 0.0
        %1745 = vmatprep.subr.mxu0 0.0
        %1746 = vmatpush1.msra.mxu0 0.0
        %1747 = vmatprep.subr.mxu0 0.0
        %1748 = vmatpush1.msra.mxu0 0.0
        %1749 = vmatprep.subr.mxu0 0.0
        %1750 = vmatpush1.msra.mxu0 0.0
        %1751 = vmatprep.subr.mxu0 0.0
        %1752 = vmatpush1.msra.mxu0 0.0
        %1753 = vmatprep.subr.mxu0 0.0
        %1754 = vmatpush1.msra.mxu0 0.0
        %1755 = vmatprep.subr.mxu0 0.0
        %1756 = vmatpush1.msra.mxu0 0.0
        %1757 = vmatprep.subr.mxu0 0.0
        %1758 = vmatpush1.msra.mxu0 0.0
        %1759 = vmatprep.subr.mxu0 0.0
        %1760 = vmatpush1.msra.mxu0 0.0
        %1761 = vmatprep.subr.mxu0 0.0
        %1762 = vmatpush1.msra.mxu0 0.0
        %1763 = vmatprep.subr.mxu0 0.0
        %1764 = vmatpush1.msra.mxu0 0.0
        %1765 = vmatprep.subr.mxu0 0.0
        %1766 = vmatpush1.msra.mxu0 0.0
        %1767 = vmatprep.subr.mxu0 0.0
        %1768 = vmatpush1.msra.mxu0 0.0
        %1769 = vmatprep.mubr.f32.mxu0 0.0
        %1770 = vmatmul.mubr.f32.gmra.mrb[0].mxu0 %v1703
        %v1771 = vpop.f32.mrb[0].mxu0
        %v1772 = vadd.f32 0.0, %v1771
        %v1773 = vpop.f32.mrb[0].mxu0
        %1774 = vdwg.mxu0
        %v1775 = vadd.f32 %v1698, %v1772
        %v1776 = vld [vmem:[%s9 + $0x18] sm:$0xff]
        %v1778 = vsel %vm912, %v1550, 0
        %1780 = vmatprep.subr.mxu0 0.0
        %1781 = vmatpush1.msra.mxu0 %v1776
        %1782 = vmatprep.subr.mxu0 0.0
        %1783 = vmatpush1.msra.mxu0 0.0
        %1784 = vmatprep.subr.mxu0 0.0
        %1785 = vmatpush1.msra.mxu0 0.0
        %1786 = vmatprep.subr.mxu0 0.0
        %1787 = vmatpush1.msra.mxu0 0.0
        %1788 = vmatprep.subr.mxu0 0.0
        %1789 = vmatpush1.msra.mxu0 0.0
        %1790 = vmatprep.subr.mxu0 0.0
        %1791 = vmatpush1.msra.mxu0 0.0
        %1792 = vmatprep.subr.mxu0 0.0
        %1793 = vmatpush1.msra.mxu0 0.0
        %1794 = vmatprep.subr.mxu0 0.0
        %1795 = vmatpush1.msra.mxu0 0.0
        %1796 = vmatprep.subr.mxu0 0.0
        %1797 = vmatpush1.msra.mxu0 0.0
        %1798 = vmatprep.subr.mxu0 0.0
        %1799 = vmatpush1.msra.mxu0 0.0
        %1800 = vmatprep.subr.mxu0 0.0
        %1801 = vmatpush1.msra.mxu0 0.0
        %1802 = vmatprep.subr.mxu0 0.0
        %1803 = vmatpush1.msra.mxu0 0.0
        %1804 = vmatprep.subr.mxu0 0.0
        %1805 = vmatpush1.msra.mxu0 0.0
        %1806 = vmatprep.subr.mxu0 0.0
        %1807 = vmatpush1.msra.mxu0 0.0
        %1808 = vmatprep.subr.mxu0 0.0
        %1809 = vmatpush1.msra.mxu0 0.0
        %1810 = vmatprep.subr.mxu0 0.0
        %1811 = vmatpush1.msra.mxu0 0.0
        %1812 = vmatprep.subr.mxu0 0.0
        %1813 = vmatpush1.msra.mxu0 0.0
        %1814 = vmatprep.subr.mxu0 0.0
        %1815 = vmatpush1.msra.mxu0 0.0
        %1816 = vmatprep.subr.mxu0 0.0
        %1817 = vmatpush1.msra.mxu0 0.0
        %1818 = vmatprep.subr.mxu0 0.0
        %1819 = vmatpush1.msra.mxu0 0.0
        %1820 = vmatprep.subr.mxu0 0.0
        %1821 = vmatpush1.msra.mxu0 0.0
        %1822 = vmatprep.subr.mxu0 0.0
        %1823 = vmatpush1.msra.mxu0 0.0
        %1824 = vmatprep.subr.mxu0 0.0
        %1825 = vmatpush1.msra.mxu0 0.0
        %1826 = vmatprep.subr.mxu0 0.0
        %1827 = vmatpush1.msra.mxu0 0.0
        %1828 = vmatprep.subr.mxu0 0.0
        %1829 = vmatpush1.msra.mxu0 0.0
        %1830 = vmatprep.subr.mxu0 0.0
        %1831 = vmatpush1.msra.mxu0 0.0
        %1832 = vmatprep.subr.mxu0 0.0
        %1833 = vmatpush1.msra.mxu0 0.0
        %1834 = vmatprep.subr.mxu0 0.0
        %1835 = vmatpush1.msra.mxu0 0.0
        %1836 = vmatprep.subr.mxu0 0.0
        %1837 = vmatpush1.msra.mxu0 0.0
        %1838 = vmatprep.subr.mxu0 0.0
        %1839 = vmatpush1.msra.mxu0 0.0
        %1840 = vmatprep.subr.mxu0 0.0
        %1841 = vmatpush1.msra.mxu0 0.0
        %1842 = vmatprep.subr.mxu0 0.0
        %1843 = vmatpush1.msra.mxu0 0.0
        %1844 = vmatprep.mubr.f32.mxu0 0.0
        %1845 = vmatmul.mubr.f32.gmra.mrb[0].mxu0 %v1778
        %v1846 = vpop.f32.mrb[0].mxu0
        %v1847 = vadd.f32 0.0, %v1846
        %v1848 = vpop.f32.mrb[0].mxu0
        %1849 = vdwg.mxu0
        %v1850 = vadd.f32 %v1775, %v1847
        %v1851 = vld [vmem:[%s10] sm:$0x1]
        %v1853 = vlaneseq
        %v1854 = vshrl.u32 %v1853, 7
        %v1855 = vsub.s32 0, %v1854
        %v1856 = vrot.slane %v1851, %v1855
        %v1858 = vadd.f32 %v1850, %v1856
        %v1859 = vadd.f32 %v805, %v1858
        %v1860 = vsel %vm817, %v1859, 0.0
        %1861 = vadd.xlane.f32.xlu0 %v1860
        %v1862 = vpop.xlane.xlu0 %1861
        %v1863 = vrcp.pop 32.0
        %v1864 = vmul.f32 %v1862, %v1863
        %v1865 = vsub.f32 %v1859, %v1864
        %v1866 = vmul.f32 %v1865, %v1865
        %v1867 = vsel %vm817, %v1866, 0.0
        %1868 = vadd.xlane.f32.xlu0 %v1867
        %v1869 = vpop.xlane.xlu0 %1868
        %v1870 = vmul.f32 %v1869, %v1863
        %v1871 = vadd.f32 %v1870, 1e-05
        %v1872 = vrsqrt.pop %v1871
        %v1873 = vmul.f32 %v1865, %v1872
        %v1874 = vld [vmem:[%s11] sm:$0x1]
        %v1876 = vlaneseq
        %v1877 = vshrl.u32 %v1876, 7
        %v1878 = vsub.s32 0, %v1877
        %v1879 = vrot.slane %v1874, %v1878
        %v1881 = vmul.f32 %v1873, %v1879
        %v1882 = vld [vmem:[%s12] sm:$0x1]
        %v1884 = vlaneseq
        %v1885 = vshrl.u32 %v1884, 7
        %v1886 = vsub.s32 0, %v1885
        %v1887 = vrot.slane %v1882, %v1886
        %v1889 = vadd.f32 %v1881, %v1887
        %1890 = vst.msk [vmem:[%s601] sm:$0xff] %vm817, %v1889
        %s1891 = sand.u32 %s348, 1
        %s1892 = scalar_lea.sflag [#allocation6], %s1891
        %s1893 = sand.u32 %s348, 1
        %s1894 = smul.addr %s1893, 8
        %s1895 = scalar_lea.vmem [#allocation18], %s1894
        // Predicated region
        $region109: #{tpu_custom_call.1} parent=71 // pred_check
          %p1896 = pneg %p358
        $region110: #{tpu_custom_call.1} parent=71 // pred_check_branch
          %1898 = sbr.rel (%p1896) target = $region112
        $region111: #{tpu_custom_call.1} parent=71 // pred_region
          %s1900 = ssub.s32 128, 128
          %1901 = vsyncadd %s1892, %s1900
          %s1902 = sadd.s32 %s41, %s40
          %s1903 = smul.addr %s1902, 128
          %s1904 = scalar_lea.hbm %s13, %s1903
          %s1906 = sshll.u32 %s1895, 4
          %s1907 = int_to_ptr.vmem [resolvable:$true] %s1906
          %1909 = dma.vmem_to_hbm [thread:$0]  %s1907, 128, %s1904, %s1892
        $region112: #{tpu_custom_call.1} parent=71 // pred_fallthru
          _
      $region72: #{tpu_custom_call.1} parent=5 // pred_fallthru
        _
      %p1910 = scmp.le.s32.totalorder 2, %s31
      // Predicated region
      $region113: #{tpu_custom_call.1} parent=5 // pred_check
        %p1911 = pneg %p1910
      $region114: #{tpu_custom_call.1} parent=5 // pred_check_branch
        %1913 = sbr.rel (%p1911) target = $region116
      $region115: #{tpu_custom_call.1} parent=5 // pred_region
        %s1914 = ssub.s32 %s31, 2
        // Predicated region
        $region117: #{tpu_custom_call.1} parent=115 // pred_check
          %p1915 = pneg %p364
        $region118: #{tpu_custom_call.1} parent=115 // pred_check_branch
          %1917 = sbr.rel (%p1915) target = $region120
        $region119: #{tpu_custom_call.1} parent=115 // pred_region
          %s1918 = sand.u32 %s349, 1
          %s1919 = scalar_lea.sflag [#allocation6], %s1918
          %s1920 = sand.u32 %s349, 1
          %s1921 = smul.addr %s1920, 8
          %s1922 = scalar_lea.vmem [#allocation18], %s1921
          %1923 = dma.done %s1919, 128
        $region120: #{tpu_custom_call.1} parent=115 // pred_fallthru
          _
      $region116: #{tpu_custom_call.1} parent=5 // pred_fallthru
        _
    $region6: #{tpu_custom_call.1} parent=1 // loop_footer
      %s35 = sadd.s32 1, %s31
    $region7: #{tpu_custom_call.1} parent=1 // loop_footer_branch
      %30 = sbr.rel target = $region3
    $region8: #{tpu_custom_call.1} parent=1 // loop_exit
      _
    %1924 = vsyncpa [#allocation5], 1
    %s1925 = scalar_lea.sflag [#allocation5], 1
    %1926 = vsyncpa %s1925, 1
    %1927 = vsyncpa [#allocation8], 1
    %s1928 = scalar_lea.sflag [#allocation8], 1
    %1929 = vsyncpa %s1928, 1
    %1930 = vsyncpa [#allocation11], 1
    %1931 = vsyncpa [#allocation14], 1
    %1932 = vsyncpa [#allocation17], 1
    %1933 = vsyncpa [#allocation6], 1
    %s1934 = scalar_lea.sflag [#allocation6], 1
    %1935 = vsyncpa %s1934, 1

</llo_original>
